<compile_context>
chip_gen: v7x
topology: tpu7x:2x2x1
jax: 0.10.0
libtpu: 0.0.40
codegen_flags: <defaults>
</compile_context>

<pallas_src>
import jax
import jax.numpy as jnp
from jax import lax
from jax.experimental import pallas as pl
from jax.experimental.pallas import tpu as pltpu

EPS = 1e-5            # nn.InstanceNorm2d default eps
KS = 3                # config_text = 'styleinstance3x3'
NHIDDEN = 128         # nhidden in the module
MATMUL_DTYPE = jnp.float32   # set to jnp.bfloat16 on v6e/v7x (re-check tolerance)


# ----------------------------------------------------------------------------
# glue: torch F.interpolate(..., mode='nearest') equivalent (pure indexing)
# ----------------------------------------------------------------------------
def nearest_resize(seg, H, W):
    h, w = seg.shape[2], seg.shape[3]
    rows = (jnp.arange(H) * h) // H
    cols = (jnp.arange(W) * w) // W
    return seg[:, :, rows][:, :, :, cols]


# ----------------------------------------------------------------------------
# fused STYLE kernel (one batch element per grid step), channel-first layout
# ----------------------------------------------------------------------------
def _make_style_kernel(H, W, matmul_dtype):
    HW = H * W
    md = matmul_dtype

    def kernel(x_ref,        # (Cn, HW)            input activations
               seg_ref,      # (T, HW)             resized segmentation map
               mask_ref,     # (9, 1, HW)          per-tap SAME-padding masks
               w1_ref,       # (NH + 2*Cn, 9*T)    fused pass-1 weights
               bsh_ref,      # (NH, 1)             mlp_shared bias
               w2_ref,       # (9, 2*Cn, NH)       blend-scaled gamma_o||beta_o weights
               bgb_ref,      # (2*Cn, 1)           combined, blend-scaled bias
               out_ref):     # (Cn, HW)
        Cn = x_ref.shape[0]
        T = seg_ref.shape[0]
        NH = bsh_ref.shape[0]

        # ---- instance-norm stats (per channel over HW; HW on lanes -> XLU reduce)
        x = x_ref[...]
        inv_n = 1.0 / float(HW)
        mean = jnp.sum(x, axis=1, keepdims=True) * inv_n
        var = jnp.sum(x * x, axis=1, keepdims=True) * inv_n - mean * mean
        var = jnp.maximum(var, 0.0)                    # guard one-pass form
        inv_std = lax.rsqrt(var + EPS)                 # (Cn, 1)

        # ---- pass 1: im2col of the 9 shifted/masked seg taps (lane-axis rolls,
        # XLU) into one (9*T, HW) patch matrix, then a SINGLE K=9*T matmul whose
        # output rows are [mlp_shared pre-activation (NH) ; style gamma||beta (2*Cn)]
        # (st fold + (1-w_gamma)/(1-w_beta) blend already folded into w1).
        seg = seg_ref[...]                             # (T, HW), loaded once
        pieces = []
        for ky in range(KS):
            for kx in range(KS):
                dy, dx = ky - 1, kx - 1
                tap = ky * KS + kx
                shift = (-(dy * W + dx)) % HW
                p = seg if shift == 0 else pltpu.roll(seg, shift=shift, axis=1)
                if not (dy == 0 and dx == 0):
                    p = p * mask_ref[tap]              # (1, HW) broadcast over T rows
                pieces.append(p)
        patches = jnp.concatenate(pieces, axis=0)      # (9*T, HW)
        out1 = jnp.dot(w1_ref[...].astype(md), patches.astype(md),
                       preferred_element_type=jnp.float32)   # (NH + 2*Cn, HW)

        # mlp_shared bias + ReLU in f32, then cast once for the pass-2 matmuls.
        act = jnp.maximum(out1[:NH, :] + bsh_ref[...], 0.0).astype(md)  # (NH, HW)
        gb = out1[NH:, :]                              # (2*Cn, HW) style contribution

        # ---- pass 2: 9 taps of the gamma_o/beta_o convs (K = NH per matmul).
        # Roll/mask the tiny (2*Cn, HW) RESULT; accumulate in registers.
        for ky in range(KS):
            for kx in range(KS):
                dy, dx = ky - 1, kx - 1
                tap = ky * KS + kx
                shift = (-(dy * W + dx)) % HW
                y = jnp.dot(w2_ref[tap].astype(md), act,
                            preferred_element_type=jnp.float32)   # (2*Cn, HW)
                if shift != 0:
                    y = pltpu.roll(y, shift=shift, axis=1)
                if not (dy == 0 and dx == 0):
                    y = y * mask_ref[tap]
                gb = gb + y
        gb = gb + bgb_ref[...]                         # pre-blended biases

        gamma = gb[:Cn, :]
        beta = gb[Cn:, :]
        out_ref[...] = ((x - mean) * inv_std) * (1.0 + gamma) + beta

    return kernel


# ----------------------------------------------------------------------------
# wrapper
# ----------------------------------------------------------------------------
def style_forward_pallas(x, seg, st, params, matmul_dtype=MATMUL_DTYPE):
    """x: (B, norm_nc, H, W)  seg: (B, label_nc, h, w)  st: (B, style_nc, label_nc, 1)."""
    B, Cn, H, W = x.shape
    T = seg.shape[1]
    NH = params['w_sh'].shape[0]
    HW = H * W

    # --- thin JAX glue: nearest resize + channel-first flatten (no transposes)
    seg_cf = nearest_resize(seg, H, W).reshape(B, T, HW)      # (B, T, HW)
    x_cf = x.reshape(B, Cn, HW)                               # (B, Cn, HW)
    st_mat = st[:, :, :, 0]                                   # (B, Cs, T)

    wg = params['w_gamma'][0]
    wb = params['w_beta'][0]

    def taps_oi(w):                                           # OIHW -> (9, O, I)
        return jnp.transpose(w, (2, 3, 0, 1)).reshape(KS * KS, w.shape[0], w.shape[1])

    # Pass-1 weights: mlp_shared (T->NH) fused with the st-folded, blend-scaled
    # style convs (T->2*Cn), flattened to ONE K=9*T matmul per sample.
    w_sh_t = taps_oi(params['w_sh'])                          # (9, NH, T)
    w_s_t = jnp.concatenate([(1.0 - wg) * taps_oi(params['w_gs']),
                             (1.0 - wb) * taps_oi(params['w_bs'])], axis=1)   # (9, 2Cn, Cs)
    w_s_fold = jnp.einsum('koc,bct->bkot', w_s_t, st_mat)     # (B, 9, 2Cn, T)
    w_sh_b = jnp.broadcast_to(w_sh_t[None], (B, KS * KS, NH, T))
    w1 = jnp.concatenate([w_sh_b, w_s_fold], axis=2)          # (B, 9, NH+2Cn, T)
    w1 = jnp.transpose(w1, (0, 2, 1, 3)).reshape(B, NH + 2 * Cn, KS * KS * T)

    # Pass-2 weights: gamma_o/beta_o convs with the blend pre-folded.
    w2 = jnp.concatenate([wg * taps_oi(params['w_go']),
                          wb * taps_oi(params['w_bo'])], axis=1)   # (9, 2Cn, NH)

    b_sh = params['b_sh'].reshape(NH, 1)
    b_gb = jnp.concatenate([wg * params['b_go'] + (1.0 - wg) * params['b_gs'],
                            wb * params['b_bo'] + (1.0 - wb) * params['b_bs']]
                           ).reshape(2 * Cn, 1)

    # SAME-padding border masks for the 9 taps (shift-after/before-matmul form),
    # precomputed once, shared by both conv passes.
    r = jnp.arange(HW, dtype=jnp.int32) // W
    c = jnp.arange(HW, dtype=jnp.int32) % W
    mask_list = []
    for ky in range(KS):
        for kx in range(KS):
            dy, dx = ky - 1, kx - 1
            ok = ((r + dy >= 0) & (r + dy < H) & (c + dx >= 0) & (c + dx < W))
            mask_list.append(ok.astype(jnp.float32))
    masks = jnp.stack(mask_list).reshape(KS * KS, 1, HW)       # (9, 1, HW)

    kernel = _make_style_kernel(H, W, matmul_dtype)
    grid_spec = pltpu.PrefetchScalarGridSpec(
        num_scalar_prefetch=0,
        grid=(B,),
        in_specs=[
            pl.BlockSpec((None, Cn, HW), lambda b: (b, 0, 0)),              # x
            pl.BlockSpec((None, T, HW), lambda b: (b, 0, 0)),               # seg
            pl.BlockSpec((KS * KS, 1, HW), lambda b: (0, 0, 0)),            # masks
            pl.BlockSpec((None, NH + 2 * Cn, KS * KS * T), lambda b: (b, 0, 0)),  # w1
            pl.BlockSpec((NH, 1), lambda b: (0, 0)),                        # b_sh
            pl.BlockSpec((KS * KS, 2 * Cn, NH), lambda b: (0, 0, 0)),       # w2
            pl.BlockSpec((2 * Cn, 1), lambda b: (0, 0)),                    # b_gb
        ],
        out_specs=pl.BlockSpec((None, Cn, HW), lambda b: (b, 0, 0)),
    )

    out_cf = pl.pallas_call(
        kernel,
        out_shape=jax.ShapeDtypeStruct((B, Cn, HW), jnp.float32),
        grid_spec=grid_spec,
        compiler_params=pltpu.CompilerParams(
            dimension_semantics=("parallel",),          # batch axis is independent
        ),
    )(x_cf, seg_cf, masks, w1, b_sh, w2, b_gb)

    return out_cf.reshape(B, Cn, H, W)                  # already NCHW


# ----------------------------------------------------------------------------
# pure-JAX reference (mirrors the PyTorch forward, NCHW) for validation
# ----------------------------------------------------------------------------
def style_forward_ref(x, seg, st, params):
    B, Cn, H, W = x.shape
    C, T = st.shape[1], st.shape[2]
    mean = jnp.mean(x, axis=(2, 3), keepdims=True)
    var = jnp.mean((x - mean) ** 2, axis=(2, 3), keepdims=True)
    normalized = (x - mean) / jnp.sqrt(var + EPS)

    segmap = nearest_resize(seg, H, W)
    st_ = jnp.broadcast_to(st, (B, C, T, H * W)).reshape(B, C, T, H, W)
    seg_ = jnp.broadcast_to(segmap[:, None], (B, C, T, H, W))
    style_map = jnp.sum(st_ * seg_, axis=2)

    def conv(inp, w, b):
        y = lax.conv_general_dilated(inp, w, (1, 1), 'SAME',
                                     dimension_numbers=('NCHW', 'OIHW', 'NCHW'),
                                     precision=lax.Precision.HIGHEST)
        return y + b[None, :, None, None]

    gamma_s = conv(style_map, params['w_gs'], params['b_gs'])
    beta_s = conv(style_map, params['w_bs'], params['b_bs'])
    actv = jax.nn.relu(conv(segmap, params['w_sh'], params['b_sh']))
    gamma_o = conv(actv, params['w_go'], params['b_go'])
    beta_o = conv(actv, params['w_bo'], params['b_bo'])
    wg = params['w_gamma'][0]
    wb = params['w_beta'][0]
    gamma = wg * gamma_o + (1.0 - wg) * gamma_s
    beta = wb * beta_o + (1.0 - wb) * beta_s
    return normalized * (1.0 + gamma) + beta


if __name__ == "__main__":
    # small shapes consistent with the module:
    #   norm_nc=4, label_nc=8 (== T), style_nc=4, nhidden=128, ks=3
    B, norm_nc, label_nc, style_nc = 2, 4, 8, 4
    H = W = 16
    hs = ws = 8    # seg comes in smaller; nearest-upsampled to (H, W)

    key = jax.random.PRNGKey(0)
    k = jax.random.split(key, 16)
    x = jax.random.normal(k[0], (B, norm_nc, H, W), jnp.float32)
    seg = jax.random.normal(k[1], (B, label_nc, hs, ws), jnp.float32)
    st = jax.random.normal(k[2], (B, style_nc, label_nc, 1), jnp.float32)

    def conv_init(kw, kb, cout, cin):
        return (jax.random.normal(kw, (cout, cin, KS, KS), jnp.float32) * 0.1,
                jax.random.normal(kb, (cout,), jnp.float32) * 0.1)

    w_sh, b_sh = conv_init(k[3], k[4], NHIDDEN, label_nc)
    w_go, b_go = conv_init(k[5], k[6], norm_nc, NHIDDEN)
    w_bo, b_bo = conv_init(k[7], k[8], norm_nc, NHIDDEN)
    w_gs, b_gs = conv_init(k[9], k[10], norm_nc, style_nc)
    w_bs, b_bs = conv_init(k[11], k[12], norm_nc, style_nc)

    params = dict(
        w_sh=w_sh, b_sh=b_sh, w_go=w_go, b_go=b_go, w_bo=w_bo, b_bo=b_bo,
        w_gs=w_gs, b_gs=b_gs, w_bs=w_bs, b_bs=b_bs,
        w_gamma=jnp.full((1,), 0.5, jnp.float32),   # torch.ones(1) * 0.5
        w_beta=jnp.full((1,), 0.5, jnp.float32),
    )

    out = jax.block_until_ready(style_forward_pallas(x, seg, st, params))
    ref = jax.block_until_ready(style_forward_ref(x, seg, st, params))

    assert out.shape == (B, norm_nc, H, W), out.shape
    err = float(jnp.max(jnp.abs(out - ref)))
    assert err < 3e-2, f"max abs err vs reference: {err}"
    print("KERNEL_OK")
</pallas_src>

<mosaic_0001>
module attributes {stable_mosaic.version = 11 : i64} {
  func.func @kernel(%arg0: i32, %arg1: memref<1x4x256xf32, #tpu.memory_space<vmem>>, %arg2: memref<1x8x256xf32, #tpu.memory_space<vmem>>, %arg3: memref<9x1x256xf32, #tpu.memory_space<vmem>>, %arg4: memref<1x136x72xf32, #tpu.memory_space<vmem>>, %arg5: memref<128x1xf32, #tpu.memory_space<vmem>>, %arg6: memref<9x8x128xf32, #tpu.memory_space<vmem>>, %arg7: memref<8x1xf32, #tpu.memory_space<vmem>>, %arg8: memref<1x4x256xf32, #tpu.memory_space<vmem>>) attributes {dimension_semantics = [#tpu.dimension_semantics<parallel>], iteration_bounds = array<i64: 2>, scalar_prefetch = 0 : i64, scratch_operands = 0 : i64, tpu.core_type = #tpu.core_type<tc>, window_params = [{transform_indices = @transform_0, window_bounds = array<i64: 1, 4, 256>}, {transform_indices = @transform_1, window_bounds = array<i64: 1, 8, 256>}, {pipeline_mode = #tpu.pipeline_mode<synchronous>, transform_indices = @transform_2, window_bounds = array<i64: 9, 1, 256>}, {transform_indices = @transform_3, window_bounds = array<i64: 1, 136, 72>}, {pipeline_mode = #tpu.pipeline_mode<synchronous>, transform_indices = @transform_4, window_bounds = array<i64: 128, 1>}, {pipeline_mode = #tpu.pipeline_mode<synchronous>, transform_indices = @transform_5, window_bounds = array<i64: 9, 8, 128>}, {pipeline_mode = #tpu.pipeline_mode<synchronous>, transform_indices = @transform_6, window_bounds = array<i64: 8, 1>}, {transform_indices = @transform_7, window_bounds = array<i64: 1, 4, 256>}]} {
    %c0 = arith.constant 0 : index
    %c0_0 = arith.constant 0 : index
    %c0_1 = arith.constant 0 : index
    %0 = vector.load %arg1[%c0, %c0_0, %c0_1] : memref<1x4x256xf32, #tpu.memory_space<vmem>>, vector<1x4x256xf32>
    %1 = vector.shape_cast %0 : vector<1x4x256xf32> to vector<4x256xf32>
    %cst = arith.constant dense<0.000000e+00> : vector<4xf32>
    %2 = vector.multi_reduction <add>, %1, %cst [1] : vector<4x256xf32> to vector<4xf32>
    %3 = vector.shape_cast %2 : vector<4xf32> to vector<4x1xf32>
    %cst_2 = arith.constant 3.906250e-03 : f32
    %4 = vector.broadcast %cst_2 : f32 to vector<4x1xf32>
    %5 = arith.mulf %3, %4 : vector<4x1xf32>
    %6 = arith.mulf %1, %1 : vector<4x256xf32>
    %cst_3 = arith.constant dense<0.000000e+00> : vector<4xf32>
    %7 = vector.multi_reduction <add>, %6, %cst_3 [1] : vector<4x256xf32> to vector<4xf32>
    %8 = vector.shape_cast %7 : vector<4xf32> to vector<4x1xf32>
    %cst_4 = arith.constant 3.906250e-03 : f32
    %9 = vector.broadcast %cst_4 : f32 to vector<4x1xf32>
    %10 = arith.mulf %8, %9 : vector<4x1xf32>
    %11 = arith.mulf %5, %5 : vector<4x1xf32>
    %12 = arith.subf %10, %11 : vector<4x1xf32>
    %cst_5 = arith.constant 0.000000e+00 : f32
    %13 = vector.broadcast %cst_5 : f32 to vector<4x1xf32>
    %14 = arith.maximumf %12, %13 : vector<4x1xf32>
    %cst_6 = arith.constant 9.99999974E-6 : f32
    %15 = vector.broadcast %cst_6 : f32 to vector<4x1xf32>
    %16 = arith.addf %14, %15 : vector<4x1xf32>
    %17 = math.rsqrt %16 : vector<4x1xf32>
    %c0_7 = arith.constant 0 : index
    %c0_8 = arith.constant 0 : index
    %c0_9 = arith.constant 0 : index
    %18 = vector.load %arg2[%c0_7, %c0_8, %c0_9] : memref<1x8x256xf32, #tpu.memory_space<vmem>>, vector<1x8x256xf32>
    %19 = vector.shape_cast %18 : vector<1x8x256xf32> to vector<8x256xf32>
    %c17_i32 = arith.constant 17 : i32
    %20 = tpu.dynamic_rotate %19 by %c17_i32 dim 1 : vector<8x256xf32>, i32 -> vector<8x256xf32>
    %c0_10 = arith.constant 0 : index
    %c0_11 = arith.constant 0 : index
    %c0_12 = arith.constant 0 : index
    %21 = vector.load %arg3[%c0_10, %c0_11, %c0_12] : memref<9x1x256xf32, #tpu.memory_space<vmem>>, vector<1x1x256xf32>
    %22 = vector.shape_cast %21 : vector<1x1x256xf32> to vector<1x256xf32>
    %23 = vector.broadcast %22 : vector<1x256xf32> to vector<8x256xf32>
    %24 = arith.mulf %20, %23 : vector<8x256xf32>
    %c16_i32 = arith.constant 16 : i32
    %25 = tpu.dynamic_rotate %19 by %c16_i32 dim 1 : vector<8x256xf32>, i32 -> vector<8x256xf32>
    %c1 = arith.constant 1 : index
    %c0_13 = arith.constant 0 : index
    %c0_14 = arith.constant 0 : index
    %26 = vector.load %arg3[%c1, %c0_13, %c0_14] : memref<9x1x256xf32, #tpu.memory_space<vmem>>, vector<1x1x256xf32>
    %27 = vector.shape_cast %26 : vector<1x1x256xf32> to vector<1x256xf32>
    %28 = vector.broadcast %27 : vector<1x256xf32> to vector<8x256xf32>
    %29 = arith.mulf %25, %28 : vector<8x256xf32>
    %c15_i32 = arith.constant 15 : i32
    %30 = tpu.dynamic_rotate %19 by %c15_i32 dim 1 : vector<8x256xf32>, i32 -> vector<8x256xf32>
    %c2 = arith.constant 2 : index
    %c0_15 = arith.constant 0 : index
    %c0_16 = arith.constant 0 : index
    %31 = vector.load %arg3[%c2, %c0_15, %c0_16] : memref<9x1x256xf32, #tpu.memory_space<vmem>>, vector<1x1x256xf32>
    %32 = vector.shape_cast %31 : vector<1x1x256xf32> to vector<1x256xf32>
    %33 = vector.broadcast %32 : vector<1x256xf32> to vector<8x256xf32>
    %34 = arith.mulf %30, %33 : vector<8x256xf32>
    %c1_i32 = arith.constant 1 : i32
    %35 = tpu.dynamic_rotate %19 by %c1_i32 dim 1 : vector<8x256xf32>, i32 -> vector<8x256xf32>
    %c3 = arith.constant 3 : index
    %c0_17 = arith.constant 0 : index
    %c0_18 = arith.constant 0 : index
    %36 = vector.load %arg3[%c3, %c0_17, %c0_18] : memref<9x1x256xf32, #tpu.memory_space<vmem>>, vector<1x1x256xf32>
    %37 = vector.shape_cast %36 : vector<1x1x256xf32> to vector<1x256xf32>
    %38 = vector.broadcast %37 : vector<1x256xf32> to vector<8x256xf32>
    %39 = arith.mulf %35, %38 : vector<8x256xf32>
    %c255_i32 = arith.constant 255 : i32
    %40 = tpu.dynamic_rotate %19 by %c255_i32 dim 1 : vector<8x256xf32>, i32 -> vector<8x256xf32>
    %c5 = arith.constant 5 : index
    %c0_19 = arith.constant 0 : index
    %c0_20 = arith.constant 0 : index
    %41 = vector.load %arg3[%c5, %c0_19, %c0_20] : memref<9x1x256xf32, #tpu.memory_space<vmem>>, vector<1x1x256xf32>
    %42 = vector.shape_cast %41 : vector<1x1x256xf32> to vector<1x256xf32>
    %43 = vector.broadcast %42 : vector<1x256xf32> to vector<8x256xf32>
    %44 = arith.mulf %40, %43 : vector<8x256xf32>
    %c241_i32 = arith.constant 241 : i32
    %45 = tpu.dynamic_rotate %19 by %c241_i32 dim 1 : vector<8x256xf32>, i32 -> vector<8x256xf32>
    %c6 = arith.constant 6 : index
    %c0_21 = arith.constant 0 : index
    %c0_22 = arith.constant 0 : index
    %46 = vector.load %arg3[%c6, %c0_21, %c0_22] : memref<9x1x256xf32, #tpu.memory_space<vmem>>, vector<1x1x256xf32>
    %47 = vector.shape_cast %46 : vector<1x1x256xf32> to vector<1x256xf32>
    %48 = vector.broadcast %47 : vector<1x256xf32> to vector<8x256xf32>
    %49 = arith.mulf %45, %48 : vector<8x256xf32>
    %c240_i32 = arith.constant 240 : i32
    %50 = tpu.dynamic_rotate %19 by %c240_i32 dim 1 : vector<8x256xf32>, i32 -> vector<8x256xf32>
    %c7 = arith.constant 7 : index
    %c0_23 = arith.constant 0 : index
    %c0_24 = arith.constant 0 : index
    %51 = vector.load %arg3[%c7, %c0_23, %c0_24] : memref<9x1x256xf32, #tpu.memory_space<vmem>>, vector<1x1x256xf32>
    %52 = vector.shape_cast %51 : vector<1x1x256xf32> to vector<1x256xf32>
    %53 = vector.broadcast %52 : vector<1x256xf32> to vector<8x256xf32>
    %54 = arith.mulf %50, %53 : vector<8x256xf32>
    %c239_i32 = arith.constant 239 : i32
    %55 = tpu.dynamic_rotate %19 by %c239_i32 dim 1 : vector<8x256xf32>, i32 -> vector<8x256xf32>
    %c8 = arith.constant 8 : index
    %c0_25 = arith.constant 0 : index
    %c0_26 = arith.constant 0 : index
    %56 = vector.load %arg3[%c8, %c0_25, %c0_26] : memref<9x1x256xf32, #tpu.memory_space<vmem>>, vector<1x1x256xf32>
    %57 = vector.shape_cast %56 : vector<1x1x256xf32> to vector<1x256xf32>
    %58 = vector.broadcast %57 : vector<1x256xf32> to vector<8x256xf32>
    %59 = arith.mulf %55, %58 : vector<8x256xf32>
    %60 = tpu.concatenate %24, %29, %34, %39, %19, %44, %49, %54, %59 in 0 : vector<8x256xf32>, vector<8x256xf32>, vector<8x256xf32>, vector<8x256xf32>, vector<8x256xf32>, vector<8x256xf32>, vector<8x256xf32>, vector<8x256xf32>, vector<8x256xf32> -> vector<72x256xf32>
    %c0_27 = arith.constant 0 : index
    %c0_28 = arith.constant 0 : index
    %c0_29 = arith.constant 0 : index
    %61 = vector.load %arg4[%c0_27, %c0_28, %c0_29] : memref<1x136x72xf32, #tpu.memory_space<vmem>>, vector<1x136x72xf32>
    %62 = vector.shape_cast %61 : vector<1x136x72xf32> to vector<136x72xf32>
    %cst_30 = arith.constant dense<0.000000e+00> : vector<136x256xf32>
    %63 = tpu.matmul %62, %60, %cst_30 {dimension_numbers = #tpu.dot_dimension_numbers<[1], [0], [0], [1], [0, 0, 1, 1], [], []>} : vector<136x72xf32>, vector<72x256xf32>, vector<136x256xf32> -> vector<136x256xf32>
    %64 = vector.extract_strided_slice %63 {offsets = [0, 0], sizes = [128, 256], strides = [1, 1]} : vector<136x256xf32> to vector<128x256xf32>
    %c0_31 = arith.constant 0 : index
    %c0_32 = arith.constant 0 : index
    %65 = vector.load %arg5[%c0_31, %c0_32] : memref<128x1xf32, #tpu.memory_space<vmem>>, vector<128x1xf32>
    %66 = vector.broadcast %65 : vector<128x1xf32> to vector<128x256xf32>
    %67 = arith.addf %64, %66 : vector<128x256xf32>
    %cst_33 = arith.constant 0.000000e+00 : f32
    %68 = vector.broadcast %cst_33 : f32 to vector<128x256xf32>
    %69 = arith.maximumf %67, %68 : vector<128x256xf32>
    %70 = vector.extract_strided_slice %63 {offsets = [128, 0], sizes = [8, 256], strides = [1, 1]} : vector<136x256xf32> to vector<8x256xf32>
    %c0_34 = arith.constant 0 : index
    %c0_35 = arith.constant 0 : index
    %c0_36 = arith.constant 0 : index
    %71 = vector.load %arg6[%c0_34, %c0_35, %c0_36] : memref<9x8x128xf32, #tpu.memory_space<vmem>>, vector<1x8x128xf32>
    %72 = vector.shape_cast %71 : vector<1x8x128xf32> to vector<8x128xf32>
    %cst_37 = arith.constant dense<0.000000e+00> : vector<8x256xf32>
    %73 = tpu.matmul %72, %69, %cst_37 {dimension_numbers = #tpu.dot_dimension_numbers<[1], [0], [0], [1], [0, 0, 1, 1], [], []>} : vector<8x128xf32>, vector<128x256xf32>, vector<8x256xf32> -> vector<8x256xf32>
    %c17_i32_38 = arith.constant 17 : i32
    %74 = tpu.dynamic_rotate %73 by %c17_i32_38 dim 1 : vector<8x256xf32>, i32 -> vector<8x256xf32>
    %c0_39 = arith.constant 0 : index
    %c0_40 = arith.constant 0 : index
    %c0_41 = arith.constant 0 : index
    %75 = vector.load %arg3[%c0_39, %c0_40, %c0_41] : memref<9x1x256xf32, #tpu.memory_space<vmem>>, vector<1x1x256xf32>
    %76 = vector.shape_cast %75 : vector<1x1x256xf32> to vector<1x256xf32>
    %77 = vector.broadcast %76 : vector<1x256xf32> to vector<8x256xf32>
    %78 = arith.mulf %74, %77 : vector<8x256xf32>
    %79 = arith.addf %70, %78 : vector<8x256xf32>
    %c1_42 = arith.constant 1 : index
    %c0_43 = arith.constant 0 : index
    %c0_44 = arith.constant 0 : index
    %80 = vector.load %arg6[%c1_42, %c0_43, %c0_44] : memref<9x8x128xf32, #tpu.memory_space<vmem>>, vector<1x8x128xf32>
    %81 = vector.shape_cast %80 : vector<1x8x128xf32> to vector<8x128xf32>
    %cst_45 = arith.constant dense<0.000000e+00> : vector<8x256xf32>
    %82 = tpu.matmul %81, %69, %cst_45 {dimension_numbers = #tpu.dot_dimension_numbers<[1], [0], [0], [1], [0, 0, 1, 1], [], []>} : vector<8x128xf32>, vector<128x256xf32>, vector<8x256xf32> -> vector<8x256xf32>
    %c16_i32_46 = arith.constant 16 : i32
    %83 = tpu.dynamic_rotate %82 by %c16_i32_46 dim 1 : vector<8x256xf32>, i32 -> vector<8x256xf32>
    %c1_47 = arith.constant 1 : index
    %c0_48 = arith.constant 0 : index
    %c0_49 = arith.constant 0 : index
    %84 = vector.load %arg3[%c1_47, %c0_48, %c0_49] : memref<9x1x256xf32, #tpu.memory_space<vmem>>, vector<1x1x256xf32>
    %85 = vector.shape_cast %84 : vector<1x1x256xf32> to vector<1x256xf32>
    %86 = vector.broadcast %85 : vector<1x256xf32> to vector<8x256xf32>
    %87 = arith.mulf %83, %86 : vector<8x256xf32>
    %88 = arith.addf %79, %87 : vector<8x256xf32>
    %c2_50 = arith.constant 2 : index
    %c0_51 = arith.constant 0 : index
    %c0_52 = arith.constant 0 : index
    %89 = vector.load %arg6[%c2_50, %c0_51, %c0_52] : memref<9x8x128xf32, #tpu.memory_space<vmem>>, vector<1x8x128xf32>
    %90 = vector.shape_cast %89 : vector<1x8x128xf32> to vector<8x128xf32>
    %cst_53 = arith.constant dense<0.000000e+00> : vector<8x256xf32>
    %91 = tpu.matmul %90, %69, %cst_53 {dimension_numbers = #tpu.dot_dimension_numbers<[1], [0], [0], [1], [0, 0, 1, 1], [], []>} : vector<8x128xf32>, vector<128x256xf32>, vector<8x256xf32> -> vector<8x256xf32>
    %c15_i32_54 = arith.constant 15 : i32
    %92 = tpu.dynamic_rotate %91 by %c15_i32_54 dim 1 : vector<8x256xf32>, i32 -> vector<8x256xf32>
    %c2_55 = arith.constant 2 : index
    %c0_56 = arith.constant 0 : index
    %c0_57 = arith.constant 0 : index
    %93 = vector.load %arg3[%c2_55, %c0_56, %c0_57] : memref<9x1x256xf32, #tpu.memory_space<vmem>>, vector<1x1x256xf32>
    %94 = vector.shape_cast %93 : vector<1x1x256xf32> to vector<1x256xf32>
    %95 = vector.broadcast %94 : vector<1x256xf32> to vector<8x256xf32>
    %96 = arith.mulf %92, %95 : vector<8x256xf32>
    %97 = arith.addf %88, %96 : vector<8x256xf32>
    %c3_58 = arith.constant 3 : index
    %c0_59 = arith.constant 0 : index
    %c0_60 = arith.constant 0 : index
    %98 = vector.load %arg6[%c3_58, %c0_59, %c0_60] : memref<9x8x128xf32, #tpu.memory_space<vmem>>, vector<1x8x128xf32>
    %99 = vector.shape_cast %98 : vector<1x8x128xf32> to vector<8x128xf32>
    %cst_61 = arith.constant dense<0.000000e+00> : vector<8x256xf32>
    %100 = tpu.matmul %99, %69, %cst_61 {dimension_numbers = #tpu.dot_dimension_numbers<[1], [0], [0], [1], [0, 0, 1, 1], [], []>} : vector<8x128xf32>, vector<128x256xf32>, vector<8x256xf32> -> vector<8x256xf32>
    %c1_i32_62 = arith.constant 1 : i32
    %101 = tpu.dynamic_rotate %100 by %c1_i32_62 dim 1 : vector<8x256xf32>, i32 -> vector<8x256xf32>
    %c3_63 = arith.constant 3 : index
    %c0_64 = arith.constant 0 : index
    %c0_65 = arith.constant 0 : index
    %102 = vector.load %arg3[%c3_63, %c0_64, %c0_65] : memref<9x1x256xf32, #tpu.memory_space<vmem>>, vector<1x1x256xf32>
    %103 = vector.shape_cast %102 : vector<1x1x256xf32> to vector<1x256xf32>
    %104 = vector.broadcast %103 : vector<1x256xf32> to vector<8x256xf32>
    %105 = arith.mulf %101, %104 : vector<8x256xf32>
    %106 = arith.addf %97, %105 : vector<8x256xf32>
    %c4 = arith.constant 4 : index
    %c0_66 = arith.constant 0 : index
    %c0_67 = arith.constant 0 : index
    %107 = vector.load %arg6[%c4, %c0_66, %c0_67] : memref<9x8x128xf32, #tpu.memory_space<vmem>>, vector<1x8x128xf32>
    %108 = vector.shape_cast %107 : vector<1x8x128xf32> to vector<8x128xf32>
    %cst_68 = arith.constant dense<0.000000e+00> : vector<8x256xf32>
    %109 = tpu.matmul %108, %69, %cst_68 {dimension_numbers = #tpu.dot_dimension_numbers<[1], [0], [0], [1], [0, 0, 1, 1], [], []>} : vector<8x128xf32>, vector<128x256xf32>, vector<8x256xf32> -> vector<8x256xf32>
    %110 = arith.addf %106, %109 : vector<8x256xf32>
    %c5_69 = arith.constant 5 : index
    %c0_70 = arith.constant 0 : index
    %c0_71 = arith.constant 0 : index
    %111 = vector.load %arg6[%c5_69, %c0_70, %c0_71] : memref<9x8x128xf32, #tpu.memory_space<vmem>>, vector<1x8x128xf32>
    %112 = vector.shape_cast %111 : vector<1x8x128xf32> to vector<8x128xf32>
    %cst_72 = arith.constant dense<0.000000e+00> : vector<8x256xf32>
    %113 = tpu.matmul %112, %69, %cst_72 {dimension_numbers = #tpu.dot_dimension_numbers<[1], [0], [0], [1], [0, 0, 1, 1], [], []>} : vector<8x128xf32>, vector<128x256xf32>, vector<8x256xf32> -> vector<8x256xf32>
    %c255_i32_73 = arith.constant 255 : i32
    %114 = tpu.dynamic_rotate %113 by %c255_i32_73 dim 1 : vector<8x256xf32>, i32 -> vector<8x256xf32>
    %c5_74 = arith.constant 5 : index
    %c0_75 = arith.constant 0 : index
    %c0_76 = arith.constant 0 : index
    %115 = vector.load %arg3[%c5_74, %c0_75, %c0_76] : memref<9x1x256xf32, #tpu.memory_space<vmem>>, vector<1x1x256xf32>
    %116 = vector.shape_cast %115 : vector<1x1x256xf32> to vector<1x256xf32>
    %117 = vector.broadcast %116 : vector<1x256xf32> to vector<8x256xf32>
    %118 = arith.mulf %114, %117 : vector<8x256xf32>
    %119 = arith.addf %110, %118 : vector<8x256xf32>
    %c6_77 = arith.constant 6 : index
    %c0_78 = arith.constant 0 : index
    %c0_79 = arith.constant 0 : index
    %120 = vector.load %arg6[%c6_77, %c0_78, %c0_79] : memref<9x8x128xf32, #tpu.memory_space<vmem>>, vector<1x8x128xf32>
    %121 = vector.shape_cast %120 : vector<1x8x128xf32> to vector<8x128xf32>
    %cst_80 = arith.constant dense<0.000000e+00> : vector<8x256xf32>
    %122 = tpu.matmul %121, %69, %cst_80 {dimension_numbers = #tpu.dot_dimension_numbers<[1], [0], [0], [1], [0, 0, 1, 1], [], []>} : vector<8x128xf32>, vector<128x256xf32>, vector<8x256xf32> -> vector<8x256xf32>
    %c241_i32_81 = arith.constant 241 : i32
    %123 = tpu.dynamic_rotate %122 by %c241_i32_81 dim 1 : vector<8x256xf32>, i32 -> vector<8x256xf32>
    %c6_82 = arith.constant 6 : index
    %c0_83 = arith.constant 0 : index
    %c0_84 = arith.constant 0 : index
    %124 = vector.load %arg3[%c6_82, %c0_83, %c0_84] : memref<9x1x256xf32, #tpu.memory_space<vmem>>, vector<1x1x256xf32>
    %125 = vector.shape_cast %124 : vector<1x1x256xf32> to vector<1x256xf32>
    %126 = vector.broadcast %125 : vector<1x256xf32> to vector<8x256xf32>
    %127 = arith.mulf %123, %126 : vector<8x256xf32>
    %128 = arith.addf %119, %127 : vector<8x256xf32>
    %c7_85 = arith.constant 7 : index
    %c0_86 = arith.constant 0 : index
    %c0_87 = arith.constant 0 : index
    %129 = vector.load %arg6[%c7_85, %c0_86, %c0_87] : memref<9x8x128xf32, #tpu.memory_space<vmem>>, vector<1x8x128xf32>
    %130 = vector.shape_cast %129 : vector<1x8x128xf32> to vector<8x128xf32>
    %cst_88 = arith.constant dense<0.000000e+00> : vector<8x256xf32>
    %131 = tpu.matmul %130, %69, %cst_88 {dimension_numbers = #tpu.dot_dimension_numbers<[1], [0], [0], [1], [0, 0, 1, 1], [], []>} : vector<8x128xf32>, vector<128x256xf32>, vector<8x256xf32> -> vector<8x256xf32>
    %c240_i32_89 = arith.constant 240 : i32
    %132 = tpu.dynamic_rotate %131 by %c240_i32_89 dim 1 : vector<8x256xf32>, i32 -> vector<8x256xf32>
    %c7_90 = arith.constant 7 : index
    %c0_91 = arith.constant 0 : index
    %c0_92 = arith.constant 0 : index
    %133 = vector.load %arg3[%c7_90, %c0_91, %c0_92] : memref<9x1x256xf32, #tpu.memory_space<vmem>>, vector<1x1x256xf32>
    %134 = vector.shape_cast %133 : vector<1x1x256xf32> to vector<1x256xf32>
    %135 = vector.broadcast %134 : vector<1x256xf32> to vector<8x256xf32>
    %136 = arith.mulf %132, %135 : vector<8x256xf32>
    %137 = arith.addf %128, %136 : vector<8x256xf32>
    %c8_93 = arith.constant 8 : index
    %c0_94 = arith.constant 0 : index
    %c0_95 = arith.constant 0 : index
    %138 = vector.load %arg6[%c8_93, %c0_94, %c0_95] : memref<9x8x128xf32, #tpu.memory_space<vmem>>, vector<1x8x128xf32>
    %139 = vector.shape_cast %138 : vector<1x8x128xf32> to vector<8x128xf32>
    %cst_96 = arith.constant dense<0.000000e+00> : vector<8x256xf32>
    %140 = tpu.matmul %139, %69, %cst_96 {dimension_numbers = #tpu.dot_dimension_numbers<[1], [0], [0], [1], [0, 0, 1, 1], [], []>} : vector<8x128xf32>, vector<128x256xf32>, vector<8x256xf32> -> vector<8x256xf32>
    %c239_i32_97 = arith.constant 239 : i32
    %141 = tpu.dynamic_rotate %140 by %c239_i32_97 dim 1 : vector<8x256xf32>, i32 -> vector<8x256xf32>
    %c8_98 = arith.constant 8 : index
    %c0_99 = arith.constant 0 : index
    %c0_100 = arith.constant 0 : index
    %142 = vector.load %arg3[%c8_98, %c0_99, %c0_100] : memref<9x1x256xf32, #tpu.memory_space<vmem>>, vector<1x1x256xf32>
    %143 = vector.shape_cast %142 : vector<1x1x256xf32> to vector<1x256xf32>
    %144 = vector.broadcast %143 : vector<1x256xf32> to vector<8x256xf32>
    %145 = arith.mulf %141, %144 : vector<8x256xf32>
    %146 = arith.addf %137, %145 : vector<8x256xf32>
    %c0_101 = arith.constant 0 : index
    %c0_102 = arith.constant 0 : index
    %147 = vector.load %arg7[%c0_101, %c0_102] : memref<8x1xf32, #tpu.memory_space<vmem>>, vector<8x1xf32>
    %148 = vector.broadcast %147 : vector<8x1xf32> to vector<8x256xf32>
    %149 = arith.addf %146, %148 : vector<8x256xf32>
    %150 = vector.extract_strided_slice %149 {offsets = [0, 0], sizes = [4, 256], strides = [1, 1]} : vector<8x256xf32> to vector<4x256xf32>
    %151 = vector.extract_strided_slice %149 {offsets = [4, 0], sizes = [4, 256], strides = [1, 1]} : vector<8x256xf32> to vector<4x256xf32>
    %152 = vector.broadcast %5 : vector<4x1xf32> to vector<4x256xf32>
    %153 = arith.subf %1, %152 : vector<4x256xf32>
    %154 = vector.broadcast %17 : vector<4x1xf32> to vector<4x256xf32>
    %155 = arith.mulf %153, %154 : vector<4x256xf32>
    %cst_103 = arith.constant 1.000000e+00 : f32
    %156 = vector.broadcast %cst_103 : f32 to vector<4x256xf32>
    %157 = arith.addf %156, %150 : vector<4x256xf32>
    %158 = arith.mulf %155, %157 : vector<4x256xf32>
    %159 = arith.addf %158, %151 : vector<4x256xf32>
    %c0_104 = arith.constant 0 : index
    %c0_105 = arith.constant 0 : index
    %c0_106 = arith.constant 0 : index
    %160 = vector.load %arg8[%c0_104, %c0_105, %c0_106] : memref<1x4x256xf32, #tpu.memory_space<vmem>>, vector<1x4x256xf32>
    %161 = vector.shape_cast %160 : vector<1x4x256xf32> to vector<4x256xf32>
    %162 = vector.shape_cast %159 : vector<4x256xf32> to vector<1x4x256xf32>
    tpu.vector_store %arg8[%c0_104, %c0_105, %c0_106], %162 {strides = array<i32>} : memref<1x4x256xf32, #tpu.memory_space<vmem>>, vector<1x4x256xf32>,
    return
  }
  func.func @transform_0(%arg0: i32) -> (i32, i32, i32) {
    %c0_i32 = arith.constant 0 : i32
    %c0_i32_0 = arith.constant 0 : i32
    %c0_i32_1 = arith.constant 0 : i32
    return %arg0, %c0_i32, %c0_i32_0 : i32, i32, i32
  }
  func.func @transform_1(%arg0: i32) -> (i32, i32, i32) {
    %c0_i32 = arith.constant 0 : i32
    %c0_i32_0 = arith.constant 0 : i32
    %c0_i32_1 = arith.constant 0 : i32
    return %arg0, %c0_i32, %c0_i32_0 : i32, i32, i32
  }
  func.func @transform_2(%arg0: i32) -> (i32, i32, i32) {
    %c0_i32 = arith.constant 0 : i32
    %c0_i32_0 = arith.constant 0 : i32
    %c0_i32_1 = arith.constant 0 : i32
    %c0_i32_2 = arith.constant 0 : i32
    return %c0_i32, %c0_i32_0, %c0_i32_1 : i32, i32, i32
  }
  func.func @transform_3(%arg0: i32) -> (i32, i32, i32) {
    %c0_i32 = arith.constant 0 : i32
    %c0_i32_0 = arith.constant 0 : i32
    %c0_i32_1 = arith.constant 0 : i32
    return %arg0, %c0_i32, %c0_i32_0 : i32, i32, i32
  }
  func.func @transform_4(%arg0: i32) -> (i32, i32) {
    %c0_i32 = arith.constant 0 : i32
    %c0_i32_0 = arith.constant 0 : i32
    %c0_i32_1 = arith.constant 0 : i32
    return %c0_i32, %c0_i32_0 : i32, i32
  }
  func.func @transform_5(%arg0: i32) -> (i32, i32, i32) {
    %c0_i32 = arith.constant 0 : i32
    %c0_i32_0 = arith.constant 0 : i32
    %c0_i32_1 = arith.constant 0 : i32
    %c0_i32_2 = arith.constant 0 : i32
    return %c0_i32, %c0_i32_0, %c0_i32_1 : i32, i32, i32
  }
  func.func @transform_6(%arg0: i32) -> (i32, i32) {
    %c0_i32 = arith.constant 0 : i32
    %c0_i32_0 = arith.constant 0 : i32
    %c0_i32_1 = arith.constant 0 : i32
    return %c0_i32, %c0_i32_0 : i32, i32
  }
  func.func @transform_7(%arg0: i32) -> (i32, i32, i32) {
    %c0_i32 = arith.constant 0 : i32
    %c0_i32_0 = arith.constant 0 : i32
    %c0_i32_1 = arith.constant 0 : i32
    return %arg0, %c0_i32, %c0_i32_0 : i32, i32, i32
  }
}

</mosaic_0001>

<llo_original>
// kernel: tpu_custom_call.1
$region0: #{tpu_custom_call.1}
  #allocation0 [shape = 'u32[]', space=smem, size = 0x4, offset = 0x4, fixed_abs, tag = 'smem constant byte address 0x4 - core index']
  #allocation1 [shape = 'u32[144,128]{1,0:T(1,128)}', space=vmem, size = 0x12000, scoped, tag = 'internal scratch']
  %s0 = inlined_call_operand.vmem [shape: f32[2,4,256], index: 0, kind: input, shape index: {}]
  %s1 = inlined_call_operand.vmem [shape: f32[2,8,256], index: 1, kind: input, shape index: {}]
  %s2 = inlined_call_operand.vmem [shape: f32[9,1,256], index: 2, kind: input, shape index: {}]
  %s3 = inlined_call_operand.hbm [shape: f32[2,136,72], index: 3, kind: input, shape index: {}]
  %s4 = inlined_call_operand.vmem [shape: f32[128,1], index: 4, kind: input, shape index: {}]
  %s5 = inlined_call_operand.vmem [shape: f32[9,8,128], index: 5, kind: input, shape index: {}]
  %s6 = inlined_call_operand.vmem [shape: f32[8,1], index: 6, kind: input, shape index: {}]
  %s7 = inlined_call_operand.hbm [shape: f32[2,4,256], index: 7, kind: output, shape index: {}]
  %s8 = sld [smem:[#allocation0]]
  $region65: #{tpu_custom_call.1} parent=0
    _
  %s10 = ssub.s32 1, %s8
  %s11 = scalar_select 0, %s10, %s8
  $region1: #{tpu_custom_call.1} parent=0
    #allocation2 [shape = 'u8[139264]{0}', space=vmem, size = 0x22000, scoped, tag = 'input window, operand 3']
    #allocation3 [shape = 's32[2]{0}', space=sflag, size = 0x8, scoped, tag = 'scoped memory for tpu_custom_call.1']
    #allocation4 [shape = 's32[2]{0}', space=sflag, size = 0x8, scoped, tag = 'scoped memory for tpu_custom_call.1']
    #allocation5 [shape = 'u8[8192]{0}', space=vmem, size = 0x2000, scoped, tag = 'output window, operand 0']
    %12 = vsyncpa [#allocation3], 0
    %s13 = scalar_lea.sflag [#allocation3], 1
    %14 = vsyncpa %s13, 0
    %15 = vsyncpa [#allocation4], 0
    %s16 = scalar_lea.sflag [#allocation4], 1
    %17 = vsyncpa %s16, 0
    loop: start=0, step=1, limit=4
    $region2: #{tpu_custom_call.1} parent=1 // loop_pre_header
      _
    $region3: #{tpu_custom_call.1} parent=1 // loop_header
      %s19 = sphi 0, %s23
      %p20 = scmp.ge.s32.totalorder %s19, 4
      %s29 = sphi 0, %s31
      %s32 = sphi 0, %s29
      %s33 = sphi 0, %s32
      %s49 = sphi 0, %s33
      %s55 = sphi 0, %s57
      %s58 = sphi 0, %s55
      %s59 = sphi 0, %s58
      %s75 = sphi 0, %s59
      %s79 = sphi 0, %s79
      %s81 = sphi 0, %s79
      %s82 = sphi 0, %s81
      %s96 = sphi 0, %s82
      %s102 = sphi 0, %s104
      %s105 = sphi 0, %s102
      %s106 = sphi 0, %s105
      %s122 = sphi 0, %s106
      %s126 = sphi 0, %s126
      %s128 = sphi 0, %s126
      %s129 = sphi 0, %s128
      %s143 = sphi 0, %s129
      %s147 = sphi 0, %s147
      %s149 = sphi 0, %s147
      %s150 = sphi 0, %s149
      %s164 = sphi 0, %s150
      %s168 = sphi 0, %s168
      %s170 = sphi 0, %s168
      %s171 = sphi 0, %s170
      %s185 = sphi 0, %s171
      %s191 = sphi 0, %s193
      %s194 = sphi 0, %s191
      %s195 = sphi 0, %s194
      %s211 = sphi 0, %s195
    $region4: #{tpu_custom_call.1} parent=1 // loop_header_branch
      %22 = sbr.rel (%p20) target = $region8
    $region5: #{tpu_custom_call.1} parent=1 // loop_body
      %s24 = ssub.s32 %s19, 1
      %s25 = ssub.s32 %s19, 2
      %s26 = sadd.s32 %s19, 1
      %s27 = ssub.s32 %s19, %s26
      %p28 = scmp.eq.s32.totalorder %s27, 0
      %s30 = sadd.s32 %s29, 1
      %s31 = scalar_select %p28, %s29, %s30
      %p34 = pneg %p28
      %p35 = scmp.eq.s32.totalorder %s19, 1
      %p36 = por %p34, %p35
      %p37 = scmp.ne.s32.totalorder %s29, %s32
      %p38 = scmp.eq.s32.totalorder %s19, 0
      %p39 = por %p37, %p38
      %p40 = scmp.ne.s32.totalorder %s29, %s32
      %p41 = scmp.eq.s32.totalorder %s24, 1
      %p42 = por %p40, %p41
      %p43 = scmp.ne.s32.totalorder %s32, %s33
      %p44 = scmp.eq.s32.totalorder %s24, 0
      %p45 = por %p43, %p44
      %p46 = scmp.ne.s32.totalorder %s32, %s33
      %p47 = scmp.eq.s32.totalorder %s25, 1
      %p48 = por %p46, %p47
      %p50 = scmp.ne.s32.totalorder %s33, %s49
      %p51 = scmp.eq.s32.totalorder %s25, 0
      %p52 = por %p50, %p51
      %s53 = ssub.s32 %s19, %s26
      %p54 = scmp.eq.s32.totalorder %s53, 0
      %s56 = sadd.s32 %s55, 1
      %s57 = scalar_select %p54, %s55, %s56
      %p60 = pneg %p54
      %p61 = scmp.eq.s32.totalorder %s19, 1
      %p62 = por %p60, %p61
      %p63 = scmp.ne.s32.totalorder %s55, %s58
      %p64 = scmp.eq.s32.totalorder %s19, 0
      %p65 = por %p63, %p64
      %p66 = scmp.ne.s32.totalorder %s55, %s58
      %p67 = scmp.eq.s32.totalorder %s24, 1
      %p68 = por %p66, %p67
      %p69 = scmp.ne.s32.totalorder %s58, %s59
      %p70 = scmp.eq.s32.totalorder %s24, 0
      %p71 = por %p69, %p70
      %p72 = scmp.ne.s32.totalorder %s58, %s59
      %p73 = scmp.eq.s32.totalorder %s25, 1
      %p74 = por %p72, %p73
      %p76 = scmp.ne.s32.totalorder %s59, %s75
      %p77 = scmp.eq.s32.totalorder %s25, 0
      %p78 = por %p76, %p77
      %s80 = sadd.s32 %s79, 1
      %p83 = scmp.eq.s32.totalorder %s19, 1
      %p84 = scmp.ne.s32.totalorder %s79, %s81
      %p85 = scmp.eq.s32.totalorder %s19, 0
      %p86 = por %p84, %p85
      %p87 = scmp.ne.s32.totalorder %s79, %s81
      %p88 = scmp.eq.s32.totalorder %s24, 1
      %p89 = por %p87, %p88
      %p90 = scmp.ne.s32.totalorder %s81, %s82
      %p91 = scmp.eq.s32.totalorder %s24, 0
      %p92 = por %p90, %p91
      %p93 = scmp.ne.s32.totalorder %s81, %s82
      %p94 = scmp.eq.s32.totalorder %s25, 1
      %p95 = por %p93, %p94
      %p97 = scmp.ne.s32.totalorder %s82, %s96
      %p98 = scmp.eq.s32.totalorder %s25, 0
      %p99 = por %p97, %p98
      %s100 = ssub.s32 %s19, %s26
      %p101 = scmp.eq.s32.totalorder %s100, 0
      %s103 = sadd.s32 %s102, 1
      %s104 = scalar_select %p101, %s102, %s103
      %p107 = pneg %p101
      %p108 = scmp.eq.s32.totalorder %s19, 1
      %p109 = por %p107, %p108
      %p110 = scmp.ne.s32.totalorder %s102, %s105
      %p111 = scmp.eq.s32.totalorder %s19, 0
      %p112 = por %p110, %p111
      %p113 = scmp.ne.s32.totalorder %s102, %s105
      %p114 = scmp.eq.s32.totalorder %s24, 1
      %p115 = por %p113, %p114
      %p116 = scmp.ne.s32.totalorder %s105, %s106
      %p117 = scmp.eq.s32.totalorder %s24, 0
      %p118 = por %p116, %p117
      %p119 = scmp.ne.s32.totalorder %s105, %s106
      %p120 = scmp.eq.s32.totalorder %s25, 1
      %p121 = por %p119, %p120
      %p123 = scmp.ne.s32.totalorder %s106, %s122
      %p124 = scmp.eq.s32.totalorder %s25, 0
      %p125 = por %p123, %p124
      %s127 = sadd.s32 %s126, 1
      %p130 = scmp.eq.s32.totalorder %s19, 1
      %p131 = scmp.ne.s32.totalorder %s126, %s128
      %p132 = scmp.eq.s32.totalorder %s19, 0
      %p133 = por %p131, %p132
      %p134 = scmp.ne.s32.totalorder %s126, %s128
      %p135 = scmp.eq.s32.totalorder %s24, 1
      %p136 = por %p134, %p135
      %p137 = scmp.ne.s32.totalorder %s128, %s129
      %p138 = scmp.eq.s32.totalorder %s24, 0
      %p139 = por %p137, %p138
      %p140 = scmp.ne.s32.totalorder %s128, %s129
      %p141 = scmp.eq.s32.totalorder %s25, 1
      %p142 = por %p140, %p141
      %p144 = scmp.ne.s32.totalorder %s129, %s143
      %p145 = scmp.eq.s32.totalorder %s25, 0
      %p146 = por %p144, %p145
      %s148 = sadd.s32 %s147, 1
      %p151 = scmp.eq.s32.totalorder %s19, 1
      %p152 = scmp.ne.s32.totalorder %s147, %s149
      %p153 = scmp.eq.s32.totalorder %s19, 0
      %p154 = por %p152, %p153
      %p155 = scmp.ne.s32.totalorder %s147, %s149
      %p156 = scmp.eq.s32.totalorder %s24, 1
      %p157 = por %p155, %p156
      %p158 = scmp.ne.s32.totalorder %s149, %s150
      %p159 = scmp.eq.s32.totalorder %s24, 0
      %p160 = por %p158, %p159
      %p161 = scmp.ne.s32.totalorder %s149, %s150
      %p162 = scmp.eq.s32.totalorder %s25, 1
      %p163 = por %p161, %p162
      %p165 = scmp.ne.s32.totalorder %s150, %s164
      %p166 = scmp.eq.s32.totalorder %s25, 0
      %p167 = por %p165, %p166
      %s169 = sadd.s32 %s168, 1
      %p172 = scmp.eq.s32.totalorder %s19, 1
      %p173 = scmp.ne.s32.totalorder %s168, %s170
      %p174 = scmp.eq.s32.totalorder %s19, 0
      %p175 = por %p173, %p174
      %p176 = scmp.ne.s32.totalorder %s168, %s170
      %p177 = scmp.eq.s32.totalorder %s24, 1
      %p178 = por %p176, %p177
      %p179 = scmp.ne.s32.totalorder %s170, %s171
      %p180 = scmp.eq.s32.totalorder %s24, 0
      %p181 = por %p179, %p180
      %p182 = scmp.ne.s32.totalorder %s170, %s171
      %p183 = scmp.eq.s32.totalorder %s25, 1
      %p184 = por %p182, %p183
      %p186 = scmp.ne.s32.totalorder %s171, %s185
      %p187 = scmp.eq.s32.totalorder %s25, 0
      %p188 = por %p186, %p187
      %s189 = ssub.s32 %s19, %s26
      %p190 = scmp.eq.s32.totalorder %s189, 0
      %s192 = sadd.s32 %s191, 1
      %s193 = scalar_select %p190, %s191, %s192
      %p196 = pneg %p190
      %p197 = scmp.eq.s32.totalorder %s19, 1
      %p198 = por %p196, %p197
      %p199 = scmp.ne.s32.totalorder %s191, %s194
      %p200 = scmp.eq.s32.totalorder %s19, 0
      %p201 = por %p199, %p200
      %p202 = scmp.ne.s32.totalorder %s191, %s194
      %p203 = scmp.eq.s32.totalorder %s24, 1
      %p204 = por %p202, %p203
      %p205 = scmp.ne.s32.totalorder %s194, %s195
      %p206 = scmp.eq.s32.totalorder %s24, 0
      %p207 = por %p205, %p206
      %p208 = scmp.ne.s32.totalorder %s194, %s195
      %p209 = scmp.eq.s32.totalorder %s25, 1
      %p210 = por %p208, %p209
      %p212 = scmp.ne.s32.totalorder %s195, %s211
      %p213 = scmp.eq.s32.totalorder %s25, 0
      %p214 = por %p212, %p213
      %p215 = scmp.le.s32.totalorder 1, %s19
      %p216 = scmp.lt.s32.totalorder %s19, 3
      %p217 = pnand %p215, %p216
      %p218 = pneg %p217
      // Predicated region
      $region9: #{tpu_custom_call.1} parent=5 // pred_check
        _
      $region10: #{tpu_custom_call.1} parent=5 // pred_check_branch
        %220 = sbr.rel (%p217) target = $region12
      $region11: #{tpu_custom_call.1} parent=5 // pred_region
        %s221 = ssub.s32 %s19, 1
        // Predicated region
        $region13: #{tpu_custom_call.1} parent=11 // pred_check
          %p222 = pneg %p92
        $region14: #{tpu_custom_call.1} parent=11 // pred_check_branch
          %224 = sbr.rel (%p222) target = $region16
        $region15: #{tpu_custom_call.1} parent=11 // pred_region
          _
        $region16: #{tpu_custom_call.1} parent=11 // pred_fallthru
          _
        // Predicated region
        $region17: #{tpu_custom_call.1} parent=11 // pred_check
          %p225 = pneg %p139
        $region18: #{tpu_custom_call.1} parent=11 // pred_check_branch
          %227 = sbr.rel (%p225) target = $region20
        $region19: #{tpu_custom_call.1} parent=11 // pred_region
          _
        $region20: #{tpu_custom_call.1} parent=11 // pred_fallthru
          _
        // Predicated region
        $region21: #{tpu_custom_call.1} parent=11 // pred_check
          %p228 = pneg %p160
        $region22: #{tpu_custom_call.1} parent=11 // pred_check_branch
          %230 = sbr.rel (%p228) target = $region24
        $region23: #{tpu_custom_call.1} parent=11 // pred_region
          _
        $region24: #{tpu_custom_call.1} parent=11 // pred_fallthru
          _
        // Predicated region
        $region25: #{tpu_custom_call.1} parent=11 // pred_check
          %p231 = pneg %p181
        $region26: #{tpu_custom_call.1} parent=11 // pred_check_branch
          %233 = sbr.rel (%p231) target = $region28
        $region27: #{tpu_custom_call.1} parent=11 // pred_region
          _
        $region28: #{tpu_custom_call.1} parent=11 // pred_fallthru
          _
      $region12: #{tpu_custom_call.1} parent=5 // pred_fallthru
        _
      %p234 = scmp.lt.s32.totalorder %s19, 2
      // Predicated region
      $region29: #{tpu_custom_call.1} parent=5 // pred_check
        %p235 = pneg %p234
      $region30: #{tpu_custom_call.1} parent=5 // pred_check_branch
        %237 = sbr.rel (%p235) target = $region32
      $region31: #{tpu_custom_call.1} parent=5 // pred_region
        // Predicated region
        $region33: #{tpu_custom_call.1} parent=31 // pred_check
          %p238 = pneg %p39
        $region34: #{tpu_custom_call.1} parent=31 // pred_check_branch
          %240 = sbr.rel (%p238) target = $region36
        $region35: #{tpu_custom_call.1} parent=31 // pred_region
          %p241 = scmp.lt.s32.totalorder %s19, 1
          %s242 = scalar_select %p241, %s19, 1
          %s243 = smul.addr %s242, 2
          %s244 = smul.addr %s243, 4
          %s245 = scalar_lea.vmem %s0, %s244
        $region36: #{tpu_custom_call.1} parent=31 // pred_fallthru
          _
        // Predicated region
        $region37: #{tpu_custom_call.1} parent=31 // pred_check
          %p246 = pneg %p65
        $region38: #{tpu_custom_call.1} parent=31 // pred_check_branch
          %248 = sbr.rel (%p246) target = $region40
        $region39: #{tpu_custom_call.1} parent=31 // pred_region
          %p249 = scmp.lt.s32.totalorder %s19, 1
          %s250 = scalar_select %p249, %s19, 1
          %s251 = smul.addr %s250, 2
          %s252 = smul.addr %s251, 8
          %s253 = scalar_lea.vmem %s1, %s252
        $region40: #{tpu_custom_call.1} parent=31 // pred_fallthru
          _
        // Predicated region
        $region41: #{tpu_custom_call.1} parent=31 // pred_check
          %p254 = pneg %p112
        $region42: #{tpu_custom_call.1} parent=31 // pred_check_branch
          %256 = sbr.rel (%p254) target = $region44
        $region43: #{tpu_custom_call.1} parent=31 // pred_region
          %s257 = sand.u32 %s102, 1
          %s258 = scalar_lea.sflag [#allocation3], %s257
          %s259 = sand.u32 %s102, 1
          %s260 = smul.addr %s259, 136
          %s261 = scalar_lea.vmem [#allocation2], %s260
          %s263 = ssub.s32 2176, 2176
          %264 = vsyncadd %s258, %s263
          %s265 = smul.addr %s19, 17
          %s266 = smul.addr %s265, 128
          %s267 = scalar_lea.hbm %s3, %s266
          %s268 = sshll.u32 %s261, 4
          %s269 = int_to_ptr.vmem [resolvable:$true] %s268
          %274 = dma.hbm_to_vmem [thread:$0]  %s267, 2176, %s269, %s258, 128, 128, 8
        $region44: #{tpu_custom_call.1} parent=31 // pred_fallthru
          _
      $region32: #{tpu_custom_call.1} parent=5 // pred_fallthru
        _
      %p275 = scmp.le.s32.totalorder 1, %s19
      %p276 = scmp.lt.s32.totalorder %s19, 3
      %p277 = pnand %p275, %p276
      %p278 = pneg %p277
      // Predicated region
      $region45: #{tpu_custom_call.1} parent=5 // pred_check
        _
      $region46: #{tpu_custom_call.1} parent=5 // pred_check_branch
        %280 = sbr.rel (%p277) target = $region48
      $region47: #{tpu_custom_call.1} parent=5 // pred_region
        %s281 = ssub.s32 %s19, 1
        %s282 = sand.u32 %s105, 1
        %s283 = scalar_lea.sflag [#allocation3], %s282
        %s284 = sand.u32 %s105, 1
        %s285 = smul.addr %s284, 136
        %s286 = scalar_lea.vmem [#allocation2], %s285
        // Predicated region
        $region49: #{tpu_custom_call.1} parent=47 // pred_check
          %p287 = pneg %p118
        $region50: #{tpu_custom_call.1} parent=47 // pred_check_branch
          %289 = sbr.rel (%p287) target = $region52
        $region51: #{tpu_custom_call.1} parent=47 // pred_region
          %290 = dma.done %s283, 2176
        $region52: #{tpu_custom_call.1} parent=47 // pred_fallthru
          _
        %p291 = scmp.lt.s32.totalorder %s24, 1
        %s292 = scalar_select %p291, %s24, 1
        %s293 = smul.addr %s292, 2
        %s294 = smul.addr %s293, 4
        %s295 = scalar_lea.vmem %s0, %s294
        %p296 = pneg %p45
        %p297 = pneg %p42
        %p298 = scmp.lt.s32.totalorder %s24, 1
        %s299 = scalar_select %p298, %s24, 1
        %s300 = smul.addr %s299, 2
        %s301 = smul.addr %s300, 8
        %s302 = scalar_lea.vmem %s1, %s301
        %p303 = pneg %p71
        %p304 = pneg %p68
        %p305 = pneg %p92
        %p306 = pneg %p89
        %s307 = sand.u32 %s105, 1
        %s308 = scalar_lea.sflag [#allocation3], %s307
        %s309 = sand.u32 %s105, 1
        %s310 = smul.addr %s309, 136
        %s311 = scalar_lea.vmem [#allocation2], %s310
        %p312 = pneg %p118
        %p313 = pneg %p115
        %p314 = pneg %p139
        %p315 = pneg %p136
        %p316 = pneg %p160
        %p317 = pneg %p157
        %p318 = pneg %p181
        %p319 = pneg %p178
        %p320 = pneg %p207
        %p321 = pneg %p204
        %s322 = sand.u32 %s194, 1
        %s323 = scalar_lea.sflag [#allocation4], %s322
        %s324 = sand.u32 %s194, 1
        %s325 = smul.addr %s324, 8
        %s326 = scalar_lea.vmem [#allocation5], %s325
        %p327 = scmp.lt.s32.totalorder %s24, 1
        %s328 = scalar_select %p327, %s24, 1
        %s329 = smul.addr %s328, 2
        %s330 = smul.addr %s329, 4
        %s331 = scalar_lea.vmem %s0, %s330
        %p332 = scmp.lt.s32.totalorder %s24, 1
        %s333 = scalar_select %p332, %s24, 1
        %s334 = smul.addr %s333, 2
        %s335 = smul.addr %s334, 8
        %s336 = scalar_lea.vmem %s1, %s335
        %v337 = vld [vmem:[%s331] sm:$0xff]
        %v339 = vcombine.high %v337, %v337
        %vm341 = vcmask 1043456
        %v342 = vsel %vm341, %v337, 0.0
        %v343 = vsel %vm341, %v339, 0.0
        %v344 = vadd.f32 %v342, %v343
        %345 = vadd.xlane.f32.xlu0 %v344
        %v346 = vpop.xlane.xlu0 %345
        %v347 = vmul.f32 %v346, 0.00390625
        %v348 = vmul.f32 %v337, %v337
        %v350 = vcombine.high %v348, %v348
        %v352 = vsel %vm341, %v348, 0.0
        %v353 = vsel %vm341, %v350, 0.0
        %v354 = vadd.f32 %v352, %v353
        %355 = vadd.xlane.f32.xlu0 %v354
        %v356 = vpop.xlane.xlu0 %355
        %v357 = vmul.f32 %v356, 0.00390625
        %v358 = vmul.f32 %v347, %v347
        %v359 = vsub.f32 %v357, %v358
        %v360 = vmax.f32 %v359, 0.0
        %v361 = vadd.f32 %v360, 1e-05
        %v362 = vrsqrt.pop %v361
        %v363 = vld [vmem:[%s336] sm:$0xff]
        %v364 = vld [vmem:[%s336 + $0x8] sm:$0xff]
        %365 = vrot.lane.b32.xlu0 %v363, 17
        %v366 = vpop.permute.xlu0 %365
        %367 = vrot.lane.b32.xlu0 %v364, 17
        %v368 = vpop.permute.xlu0 %367
        %v369 = vlaneseq
        %v370 = vand.u32 %v369, 127
        %vm371 = vcmp.lt.s32.totalorder %v370, 17
        %v372 = vsel %vm371, %v366, %v368
        %v373 = vsel %vm371, %v368, %v366
        %v374 = vld [vmem:[%s2] sm:$0x3]
        %v376 = vlaneseq
        %v377 = vshrl.u32 %v376, 7
        %v378 = vsub.s32 0, %v377
        %v379 = vrot.slane %v374, %v378
        %v380 = vlaneseq
        %v381 = vshrl.u32 %v380, 7
        %v382 = vsub.s32 1, %v381
        %v383 = vrot.slane %v374, %v382
        %v386 = vmul.f32 %v373, %v379
        %v387 = vmul.f32 %v372, %v383
        %388 = vrot.lane.b32.xlu0 %v363, 16
        %v389 = vpop.permute.xlu0 %388
        %390 = vrot.lane.b32.xlu0 %v364, 16
        %v391 = vpop.permute.xlu0 %390
        %vm392 = vcmp.lt.s32.totalorder %v370, 16
        %v393 = vsel %vm392, %v389, %v391
        %v394 = vsel %vm392, %v391, %v389
        %s395 = scalar_lea.vmem %s2, 2
        %v396 = vld [vmem:[%s395] sm:$0x3]
        %v398 = vlaneseq
        %v399 = vshrl.u32 %v398, 7
        %v400 = vsub.s32 0, %v399
        %v401 = vrot.slane %v396, %v400
        %v402 = vlaneseq
        %v403 = vshrl.u32 %v402, 7
        %v404 = vsub.s32 1, %v403
        %v405 = vrot.slane %v396, %v404
        %v408 = vmul.f32 %v394, %v401
        %v409 = vmul.f32 %v393, %v405
        %410 = vrot.lane.b32.xlu0 %v363, 15
        %v411 = vpop.permute.xlu0 %410
        %412 = vrot.lane.b32.xlu0 %v364, 15
        %v413 = vpop.permute.xlu0 %412
        %vm414 = vcmp.lt.s32.totalorder %v370, 15
        %v415 = vsel %vm414, %v411, %v413
        %v416 = vsel %vm414, %v413, %v411
        %s417 = scalar_lea.vmem %s2, 4
        %v418 = vld [vmem:[%s417] sm:$0x3]
        %v420 = vlaneseq
        %v421 = vshrl.u32 %v420, 7
        %v422 = vsub.s32 0, %v421
        %v423 = vrot.slane %v418, %v422
        %v424 = vlaneseq
        %v425 = vshrl.u32 %v424, 7
        %v426 = vsub.s32 1, %v425
        %v427 = vrot.slane %v418, %v426
        %v430 = vmul.f32 %v416, %v423
        %v431 = vmul.f32 %v415, %v427
        %432 = vrot.lane.b32.xlu0 %v363, 1
        %v433 = vpop.permute.xlu0 %432
        %434 = vrot.lane.b32.xlu0 %v364, 1
        %v435 = vpop.permute.xlu0 %434
        %vm436 = vcmp.lt.s32.totalorder %v370, 1
        %v437 = vsel %vm436, %v433, %v435
        %v438 = vsel %vm436, %v435, %v433
        %s439 = scalar_lea.vmem %s2, 6
        %v440 = vld [vmem:[%s439] sm:$0x3]
        %v442 = vlaneseq
        %v443 = vshrl.u32 %v442, 7
        %v444 = vsub.s32 0, %v443
        %v445 = vrot.slane %v440, %v444
        %v446 = vlaneseq
        %v447 = vshrl.u32 %v446, 7
        %v448 = vsub.s32 1, %v447
        %v449 = vrot.slane %v440, %v448
        %v452 = vmul.f32 %v438, %v445
        %v453 = vmul.f32 %v437, %v449
        %454 = vrot.lane.b32.xlu0 %v363, 127
        %v455 = vpop.permute.xlu0 %454
        %456 = vrot.lane.b32.xlu0 %v364, 127
        %v457 = vpop.permute.xlu0 %456
        %vm458 = vcmp.lt.s32.totalorder %v370, 127
        %v459 = vsel %vm458, %v455, %v457
        %v460 = vsel %vm458, %v457, %v455
        %s461 = scalar_lea.vmem %s2, 10
        %v462 = vld [vmem:[%s461] sm:$0x3]
        %v464 = vlaneseq
        %v465 = vshrl.u32 %v464, 7
        %v466 = vsub.s32 0, %v465
        %v467 = vrot.slane %v462, %v466
        %v468 = vlaneseq
        %v469 = vshrl.u32 %v468, 7
        %v470 = vsub.s32 1, %v469
        %v471 = vrot.slane %v462, %v470
        %v474 = vmul.f32 %v459, %v467
        %v475 = vmul.f32 %v460, %v471
        %476 = vrot.lane.b32.xlu0 %v363, 113
        %v477 = vpop.permute.xlu0 %476
        %478 = vrot.lane.b32.xlu0 %v364, 113
        %v479 = vpop.permute.xlu0 %478
        %vm480 = vcmp.lt.s32.totalorder %v370, 113
        %v481 = vsel %vm480, %v477, %v479
        %v482 = vsel %vm480, %v479, %v477
        %s483 = scalar_lea.vmem %s2, 12
        %v484 = vld [vmem:[%s483] sm:$0x3]
        %v486 = vlaneseq
        %v487 = vshrl.u32 %v486, 7
        %v488 = vsub.s32 0, %v487
        %v489 = vrot.slane %v484, %v488
        %v490 = vlaneseq
        %v491 = vshrl.u32 %v490, 7
        %v492 = vsub.s32 1, %v491
        %v493 = vrot.slane %v484, %v492
        %v496 = vmul.f32 %v481, %v489
        %v497 = vmul.f32 %v482, %v493
        %498 = vrot.lane.b32.xlu0 %v363, 112
        %v499 = vpop.permute.xlu0 %498
        %500 = vrot.lane.b32.xlu0 %v364, 112
        %v501 = vpop.permute.xlu0 %500
        %vm502 = vcmp.lt.s32.totalorder %v370, 112
        %v503 = vsel %vm502, %v499, %v501
        %v504 = vsel %vm502, %v501, %v499
        %s505 = scalar_lea.vmem %s2, 14
        %v506 = vld [vmem:[%s505] sm:$0x3]
        %v508 = vlaneseq
        %v509 = vshrl.u32 %v508, 7
        %v510 = vsub.s32 0, %v509
        %v511 = vrot.slane %v506, %v510
        %v512 = vlaneseq
        %v513 = vshrl.u32 %v512, 7
        %v514 = vsub.s32 1, %v513
        %v515 = vrot.slane %v506, %v514
        %v518 = vmul.f32 %v503, %v511
        %v519 = vmul.f32 %v504, %v515
        %520 = vrot.lane.b32.xlu0 %v363, 111
        %v521 = vpop.permute.xlu0 %520
        %522 = vrot.lane.b32.xlu0 %v364, 111
        %v523 = vpop.permute.xlu0 %522
        %vm524 = vcmp.lt.s32.totalorder %v370, 111
        %v525 = vsel %vm524, %v521, %v523
        %v526 = vsel %vm524, %v523, %v521
        %s527 = scalar_lea.vmem %s2, 16
        %v528 = vld [vmem:[%s527] sm:$0x3]
        %v530 = vlaneseq
        %v531 = vshrl.u32 %v530, 7
        %v532 = vsub.s32 0, %v531
        %v533 = vrot.slane %v528, %v532
        %v534 = vlaneseq
        %v535 = vshrl.u32 %v534, 7
        %v536 = vsub.s32 1, %v535
        %v537 = vrot.slane %v528, %v536
        %v540 = vmul.f32 %v525, %v533
        %v541 = vmul.f32 %v526, %v537
        %v542 = vld [vmem:[%s286] sm:$0xff]
        %v543 = vld [vmem:[%s286 + $0x8] sm:$0xff]
        %v544 = vld [vmem:[%s286 + $0x10] sm:$0xff]
        %v545 = vld [vmem:[%s286 + $0x18] sm:$0xff]
        %v546 = vld [vmem:[%s286 + $0x20] sm:$0xff]
        %v547 = vld [vmem:[%s286 + $0x28] sm:$0xff]
        %v548 = vld [vmem:[%s286 + $0x30] sm:$0xff]
        %v549 = vld [vmem:[%s286 + $0x38] sm:$0xff]
        %v550 = vld [vmem:[%s286 + $0x40] sm:$0xff]
        %v551 = vld [vmem:[%s286 + $0x48] sm:$0xff]
        %v552 = vld [vmem:[%s286 + $0x50] sm:$0xff]
        %v553 = vld [vmem:[%s286 + $0x58] sm:$0xff]
        %v554 = vld [vmem:[%s286 + $0x60] sm:$0xff]
        %v555 = vld [vmem:[%s286 + $0x68] sm:$0xff]
        %v556 = vld [vmem:[%s286 + $0x70] sm:$0xff]
        %v557 = vld [vmem:[%s286 + $0x78] sm:$0xff]
        %v558 = vld [vmem:[%s286 + $0x80] sm:$0xff]
        %vm559 = vcmask 588800
        %v561 = vsel %vm559, %v542, 0
        %v564 = vsel %vm559, %v543, 0
        %v567 = vsel %vm559, %v544, 0
        %v570 = vsel %vm559, %v545, 0
        %v573 = vsel %vm559, %v546, 0
        %v576 = vsel %vm559, %v547, 0
        %v579 = vsel %vm559, %v548, 0
        %v582 = vsel %vm559, %v549, 0
        %v585 = vsel %vm559, %v550, 0
        %v588 = vsel %vm559, %v551, 0
        %v591 = vsel %vm559, %v552, 0
        %v594 = vsel %vm559, %v553, 0
        %v597 = vsel %vm559, %v554, 0
        %v600 = vsel %vm559, %v555, 0
        %v603 = vsel %vm559, %v556, 0
        %v606 = vsel %vm559, %v557, 0
        %v609 = vsel %vm559, %v558, 0
        %611 = vmatprep.subr.mxu0 %v387
        %612 = vmatpush1.msra.mxu0 %v386
        %613 = vmatprep.subr.mxu0 %v409
        %614 = vmatpush1.msra.mxu0 %v408
        %615 = vmatprep.subr.mxu0 %v431
        %616 = vmatpush1.msra.mxu0 %v430
        %617 = vmatprep.subr.mxu0 %v453
        %618 = vmatpush1.msra.mxu0 %v452
        %619 = vmatprep.subr.mxu0 %v364
        %620 = vmatpush1.msra.mxu0 %v363
        %621 = vmatprep.subr.mxu0 %v475
        %622 = vmatpush1.msra.mxu0 %v474
        %623 = vmatprep.subr.mxu0 %v497
        %624 = vmatpush1.msra.mxu0 %v496
        %625 = vmatprep.subr.mxu0 %v519
        %626 = vmatpush1.msra.mxu0 %v518
        %627 = vmatprep.subr.mxu0 %v541
        %628 = vmatpush1.msra.mxu0 %v540
        %629 = vmatprep.subr.mxu0 0.0
        %630 = vmatpush1.msra.mxu0 0.0
        %631 = vmatprep.subr.mxu0 0.0
        %632 = vmatpush1.msra.mxu0 0.0
        %633 = vmatprep.subr.mxu0 0.0
        %634 = vmatpush1.msra.mxu0 0.0
        %635 = vmatprep.subr.mxu0 0.0
        %636 = vmatpush1.msra.mxu0 0.0
        %637 = vmatprep.subr.mxu0 0.0
        %638 = vmatpush1.msra.mxu0 0.0
        %639 = vmatprep.subr.mxu0 0.0
        %640 = vmatpush1.msra.mxu0 0.0
        %641 = vmatprep.subr.mxu0 0.0
        %642 = vmatpush1.msra.mxu0 0.0
        %643 = vmatprep.subr.mxu0 0.0
        %644 = vmatpush1.msra.mxu0 0.0
        %645 = vmatprep.subr.mxu0 0.0
        %646 = vmatpush1.msra.mxu0 0.0
        %647 = vmatprep.subr.mxu0 0.0
        %648 = vmatpush1.msra.mxu0 0.0
        %649 = vmatprep.subr.mxu0 0.0
        %650 = vmatpush1.msra.mxu0 0.0
        %651 = vmatprep.subr.mxu0 0.0
        %652 = vmatpush1.msra.mxu0 0.0
        %653 = vmatprep.subr.mxu0 0.0
        %654 = vmatpush1.msra.mxu0 0.0
        %655 = vmatprep.subr.mxu0 0.0
        %656 = vmatpush1.msra.mxu0 0.0
        %657 = vmatprep.subr.mxu0 0.0
        %658 = vmatpush1.msra.mxu0 0.0
        %659 = vmatprep.subr.mxu0 0.0
        %660 = vmatpush1.msra.mxu0 0.0
        %661 = vmatprep.subr.mxu0 0.0
        %662 = vmatpush1.msra.mxu0 0.0
        %663 = vmatprep.subr.mxu0 0.0
        %664 = vmatpush1.msra.mxu0 0.0
        %665 = vmatprep.subr.mxu0 0.0
        %666 = vmatpush1.msra.mxu0 0.0
        %667 = vmatprep.subr.mxu0 0.0
        %668 = vmatpush1.msra.mxu0 0.0
        %669 = vmatprep.subr.mxu0 0.0
        %670 = vmatpush1.msra.mxu0 0.0
        %671 = vmatprep.subr.mxu0 0.0
        %672 = vmatpush1.msra.mxu0 0.0
        %673 = vmatprep.subr.mxu0 0.0
        %674 = vmatpush1.msra.mxu0 0.0
        %675 = vmatprep.mubr.f32.mxu0 0.0
        %676 = vmatmul.mubr.f32.gmra.mrb[0].mxu0 %v561
        %v677 = vpop.f32.mrb[0].mxu0
        %v678 = vadd.f32 0.0, %v677
        %v679 = vpop.f32.mrb[0].mxu0
        %v680 = vadd.f32 0.0, %v679
        %681 = vmatprep.mubr.f32.mxu0 0.0
        %682 = vmatmul.mubr.f32.gmra.mrb[0].mxu0 %v564
        %v683 = vpop.f32.mrb[0].mxu0
        %v684 = vadd.f32 0.0, %v683
        %v685 = vpop.f32.mrb[0].mxu0
        %v686 = vadd.f32 0.0, %v685
        %687 = vmatprep.mubr.f32.mxu0 0.0
        %688 = vmatmul.mubr.f32.gmra.mrb[0].mxu0 %v567
        %v689 = vpop.f32.mrb[0].mxu0
        %v690 = vadd.f32 0.0, %v689
        %v691 = vpop.f32.mrb[0].mxu0
        %v692 = vadd.f32 0.0, %v691
        %693 = vmatprep.mubr.f32.mxu0 0.0
        %694 = vmatmul.mubr.f32.gmra.mrb[0].mxu0 %v570
        %v695 = vpop.f32.mrb[0].mxu0
        %v696 = vadd.f32 0.0, %v695
        %v697 = vpop.f32.mrb[0].mxu0
        %v698 = vadd.f32 0.0, %v697
        %699 = vmatprep.mubr.f32.mxu0 0.0
        %700 = vmatmul.mubr.f32.gmra.mrb[0].mxu0 %v573
        %v701 = vpop.f32.mrb[0].mxu0
        %v702 = vadd.f32 0.0, %v701
        %v703 = vpop.f32.mrb[0].mxu0
        %v704 = vadd.f32 0.0, %v703
        %705 = vmatprep.mubr.f32.mxu0 0.0
        %706 = vmatmul.mubr.f32.gmra.mrb[0].mxu0 %v576
        %v707 = vpop.f32.mrb[0].mxu0
        %v708 = vadd.f32 0.0, %v707
        %v709 = vpop.f32.mrb[0].mxu0
        %v710 = vadd.f32 0.0, %v709
        %711 = vmatprep.mubr.f32.mxu0 0.0
        %712 = vmatmul.mubr.f32.gmra.mrb[0].mxu0 %v579
        %v713 = vpop.f32.mrb[0].mxu0
        %v714 = vadd.f32 0.0, %v713
        %v715 = vpop.f32.mrb[0].mxu0
        %v716 = vadd.f32 0.0, %v715
        %717 = vmatprep.mubr.f32.mxu0 0.0
        %718 = vmatmul.mubr.f32.gmra.mrb[0].mxu0 %v582
        %v719 = vpop.f32.mrb[0].mxu0
        %v720 = vadd.f32 0.0, %v719
        %v721 = vpop.f32.mrb[0].mxu0
        %v722 = vadd.f32 0.0, %v721
        %723 = vmatprep.mubr.f32.mxu0 0.0
        %724 = vmatmul.mubr.f32.gmra.mrb[0].mxu0 %v585
        %v725 = vpop.f32.mrb[0].mxu0
        %v726 = vadd.f32 0.0, %v725
        %v727 = vpop.f32.mrb[0].mxu0
        %v728 = vadd.f32 0.0, %v727
        %729 = vmatprep.mubr.f32.mxu0 0.0
        %730 = vmatmul.mubr.f32.gmra.mrb[0].mxu0 %v588
        %v731 = vpop.f32.mrb[0].mxu0
        %v732 = vadd.f32 0.0, %v731
        %v733 = vpop.f32.mrb[0].mxu0
        %v734 = vadd.f32 0.0, %v733
        %735 = vmatprep.mubr.f32.mxu0 0.0
        %736 = vmatmul.mubr.f32.gmra.mrb[0].mxu0 %v591
        %v737 = vpop.f32.mrb[0].mxu0
        %v738 = vadd.f32 0.0, %v737
        %v739 = vpop.f32.mrb[0].mxu0
        %v740 = vadd.f32 0.0, %v739
        %741 = vmatprep.mubr.f32.mxu0 0.0
        %742 = vmatmul.mubr.f32.gmra.mrb[0].mxu0 %v594
        %v743 = vpop.f32.mrb[0].mxu0
        %v744 = vadd.f32 0.0, %v743
        %v745 = vpop.f32.mrb[0].mxu0
        %v746 = vadd.f32 0.0, %v745
        %747 = vmatprep.mubr.f32.mxu0 0.0
        %748 = vmatmul.mubr.f32.gmra.mrb[0].mxu0 %v597
        %v749 = vpop.f32.mrb[0].mxu0
        %v750 = vadd.f32 0.0, %v749
        %v751 = vpop.f32.mrb[0].mxu0
        %v752 = vadd.f32 0.0, %v751
        %753 = vmatprep.mubr.f32.mxu0 0.0
        %754 = vmatmul.mubr.f32.gmra.mrb[0].mxu0 %v600
        %v755 = vpop.f32.mrb[0].mxu0
        %v756 = vadd.f32 0.0, %v755
        %v757 = vpop.f32.mrb[0].mxu0
        %v758 = vadd.f32 0.0, %v757
        %759 = vmatprep.mubr.f32.mxu0 0.0
        %760 = vmatmul.mubr.f32.gmra.mrb[0].mxu0 %v603
        %v761 = vpop.f32.mrb[0].mxu0
        %v762 = vadd.f32 0.0, %v761
        %v763 = vpop.f32.mrb[0].mxu0
        %v764 = vadd.f32 0.0, %v763
        %765 = vmatprep.mubr.f32.mxu0 0.0
        %766 = vmatmul.mubr.f32.gmra.mrb[0].mxu0 %v606
        %v767 = vpop.f32.mrb[0].mxu0
        %v768 = vadd.f32 0.0, %v767
        %v769 = vpop.f32.mrb[0].mxu0
        %v770 = vadd.f32 0.0, %v769
        %771 = vmatprep.mubr.f32.mxu0 0.0
        %772 = vmatmul.mubr.f32.gmra.mrb[0].mxu0 %v609
        %v773 = vpop.f32.mrb[0].mxu0
        %v774 = vadd.f32 0.0, %v773
        %v775 = vpop.f32.mrb[0].mxu0
        %v776 = vadd.f32 0.0, %v775
        %777 = vdwg.mxu0
        %v778 = vld [vmem:[%s4] sm:$0xff]
        %v779 = vld [vmem:[%s4 + $0x8] sm:$0xff]
        %v780 = vld [vmem:[%s4 + $0x10] sm:$0xff]
        %v781 = vld [vmem:[%s4 + $0x18] sm:$0xff]
        %v782 = vld [vmem:[%s4 + $0x20] sm:$0xff]
        %v783 = vld [vmem:[%s4 + $0x28] sm:$0xff]
        %v784 = vld [vmem:[%s4 + $0x30] sm:$0xff]
        %v785 = vld [vmem:[%s4 + $0x38] sm:$0xff]
        %v786 = vld [vmem:[%s4 + $0x40] sm:$0xff]
        %v787 = vld [vmem:[%s4 + $0x48] sm:$0xff]
        %v788 = vld [vmem:[%s4 + $0x50] sm:$0xff]
        %v789 = vld [vmem:[%s4 + $0x58] sm:$0xff]
        %v790 = vld [vmem:[%s4 + $0x60] sm:$0xff]
        %v791 = vld [vmem:[%s4 + $0x68] sm:$0xff]
        %v792 = vld [vmem:[%s4 + $0x70] sm:$0xff]
        %v793 = vld [vmem:[%s4 + $0x78] sm:$0xff]
        %795 = vset.pattern.permute.xlu0 0
        %796 = vperm.xlu0 %795, %v778
        %v797 = vpop.permute.xlu0 %796
        %800 = vset.pattern.permute.xlu0 0
        %801 = vperm.xlu0 %800, %v779
        %v802 = vpop.permute.xlu0 %801
        %805 = vset.pattern.permute.xlu0 0
        %806 = vperm.xlu0 %805, %v780
        %v807 = vpop.permute.xlu0 %806
        %810 = vset.pattern.permute.xlu0 0
        %811 = vperm.xlu0 %810, %v781
        %v812 = vpop.permute.xlu0 %811
        %815 = vset.pattern.permute.xlu0 0
        %816 = vperm.xlu0 %815, %v782
        %v817 = vpop.permute.xlu0 %816
        %820 = vset.pattern.permute.xlu0 0
        %821 = vperm.xlu0 %820, %v783
        %v822 = vpop.permute.xlu0 %821
        %825 = vset.pattern.permute.xlu0 0
        %826 = vperm.xlu0 %825, %v784
        %v827 = vpop.permute.xlu0 %826
        %830 = vset.pattern.permute.xlu0 0
        %831 = vperm.xlu0 %830, %v785
        %v832 = vpop.permute.xlu0 %831
        %835 = vset.pattern.permute.xlu0 0
        %836 = vperm.xlu0 %835, %v786
        %v837 = vpop.permute.xlu0 %836
        %840 = vset.pattern.permute.xlu0 0
        %841 = vperm.xlu0 %840, %v787
        %v842 = vpop.permute.xlu0 %841
        %845 = vset.pattern.permute.xlu0 0
        %846 = vperm.xlu0 %845, %v788
        %v847 = vpop.permute.xlu0 %846
        %850 = vset.pattern.permute.xlu0 0
        %851 = vperm.xlu0 %850, %v789
        %v852 = vpop.permute.xlu0 %851
        %855 = vset.pattern.permute.xlu0 0
        %856 = vperm.xlu0 %855, %v790
        %v857 = vpop.permute.xlu0 %856
        %860 = vset.pattern.permute.xlu0 0
        %861 = vperm.xlu0 %860, %v791
        %v862 = vpop.permute.xlu0 %861
        %865 = vset.pattern.permute.xlu0 0
        %866 = vperm.xlu0 %865, %v792
        %v867 = vpop.permute.xlu0 %866
        %870 = vset.pattern.permute.xlu0 0
        %871 = vperm.xlu0 %870, %v793
        %v872 = vpop.permute.xlu0 %871
        %v874 = vadd.f32 %v678, %v797
        %v875 = vadd.f32 %v680, %v797
        %v876 = vadd.f32 %v684, %v802
        %v877 = vadd.f32 %v686, %v802
        %v878 = vadd.f32 %v690, %v807
        %v879 = vadd.f32 %v692, %v807
        %v880 = vadd.f32 %v696, %v812
        %v881 = vadd.f32 %v698, %v812
        %v882 = vadd.f32 %v702, %v817
        %v883 = vadd.f32 %v704, %v817
        %v884 = vadd.f32 %v708, %v822
        %v885 = vadd.f32 %v710, %v822
        %v886 = vadd.f32 %v714, %v827
        %v887 = vadd.f32 %v716, %v827
        %v888 = vadd.f32 %v720, %v832
        %v889 = vadd.f32 %v722, %v832
        %v890 = vadd.f32 %v726, %v837
        %v891 = vadd.f32 %v728, %v837
        %v892 = vadd.f32 %v732, %v842
        %v893 = vadd.f32 %v734, %v842
        %v894 = vadd.f32 %v738, %v847
        %v895 = vadd.f32 %v740, %v847
        %v896 = vadd.f32 %v744, %v852
        %v897 = vadd.f32 %v746, %v852
        %v898 = vadd.f32 %v750, %v857
        %v899 = vadd.f32 %v752, %v857
        %v900 = vadd.f32 %v756, %v862
        %v901 = vadd.f32 %v758, %v862
        %v902 = vadd.f32 %v762, %v867
        %v903 = vadd.f32 %v764, %v867
        %v904 = vadd.f32 %v768, %v872
        %v905 = vadd.f32 %v770, %v872
        %v906 = vmax.f32 %v874, 0.0
        %v907 = vmax.f32 %v875, 0.0
        %v908 = vmax.f32 %v876, 0.0
        %v909 = vmax.f32 %v877, 0.0
        %v910 = vmax.f32 %v878, 0.0
        %v911 = vmax.f32 %v879, 0.0
        %v912 = vmax.f32 %v880, 0.0
        %v913 = vmax.f32 %v881, 0.0
        %v914 = vmax.f32 %v882, 0.0
        %v915 = vmax.f32 %v883, 0.0
        %v916 = vmax.f32 %v884, 0.0
        %v917 = vmax.f32 %v885, 0.0
        %v918 = vmax.f32 %v886, 0.0
        %v919 = vmax.f32 %v887, 0.0
        %v920 = vmax.f32 %v888, 0.0
        %v921 = vmax.f32 %v889, 0.0
        %v922 = vmax.f32 %v890, 0.0
        %v923 = vmax.f32 %v891, 0.0
        %v924 = vmax.f32 %v892, 0.0
        %v925 = vmax.f32 %v893, 0.0
        %v926 = vmax.f32 %v894, 0.0
        %v927 = vmax.f32 %v895, 0.0
        %v928 = vmax.f32 %v896, 0.0
        %v929 = vmax.f32 %v897, 0.0
        %v930 = vmax.f32 %v898, 0.0
        %v931 = vmax.f32 %v899, 0.0
        %v932 = vmax.f32 %v900, 0.0
        %v933 = vmax.f32 %v901, 0.0
        %v934 = vmax.f32 %v902, 0.0
        %v935 = vmax.f32 %v903, 0.0
        %v936 = vmax.f32 %v904, 0.0
        %v937 = vmax.f32 %v905, 0.0
        %v938 = vld [vmem:[%s5] sm:$0xff]
        %939 = vmatprep.subr.mxu0 %v907
        %940 = vmatpush1.msra.mxu0 %v906
        %941 = vmatprep.subr.mxu0 %v909
        %942 = vmatpush1.msra.mxu0 %v908
        %943 = vmatprep.subr.mxu0 %v911
        %944 = vmatpush1.msra.mxu0 %v910
        %945 = vmatprep.subr.mxu0 %v913
        %946 = vmatpush1.msra.mxu0 %v912
        %947 = vmatprep.subr.mxu0 %v915
        %948 = vmatpush1.msra.mxu0 %v914
        %949 = vmatprep.subr.mxu0 %v917
        %950 = vmatpush1.msra.mxu0 %v916
        %951 = vmatprep.subr.mxu0 %v919
        %952 = vmatpush1.msra.mxu0 %v918
        %953 = vmatprep.subr.mxu0 %v921
        %954 = vmatpush1.msra.mxu0 %v920
        %955 = vmatprep.subr.mxu0 %v923
        %956 = vmatpush1.msra.mxu0 %v922
        %957 = vmatprep.subr.mxu0 %v925
        %958 = vmatpush1.msra.mxu0 %v924
        %959 = vmatprep.subr.mxu0 %v927
        %960 = vmatpush1.msra.mxu0 %v926
        %961 = vmatprep.subr.mxu0 %v929
        %962 = vmatpush1.msra.mxu0 %v928
        %963 = vmatprep.subr.mxu0 %v931
        %964 = vmatpush1.msra.mxu0 %v930
        %965 = vmatprep.subr.mxu0 %v933
        %966 = vmatpush1.msra.mxu0 %v932
        %967 = vmatprep.subr.mxu0 %v935
        %968 = vmatpush1.msra.mxu0 %v934
        %969 = vmatprep.subr.mxu0 %v937
        %970 = vmatpush1.msra.mxu0 %v936
        %971 = vmatprep.subr.mxu0 0.0
        %972 = vmatpush1.msra.mxu0 0.0
        %973 = vmatprep.subr.mxu0 0.0
        %974 = vmatpush1.msra.mxu0 0.0
        %975 = vmatprep.subr.mxu0 0.0
        %976 = vmatpush1.msra.mxu0 0.0
        %977 = vmatprep.subr.mxu0 0.0
        %978 = vmatpush1.msra.mxu0 0.0
        %979 = vmatprep.subr.mxu0 0.0
        %980 = vmatpush1.msra.mxu0 0.0
        %981 = vmatprep.subr.mxu0 0.0
        %982 = vmatpush1.msra.mxu0 0.0
        %983 = vmatprep.subr.mxu0 0.0
        %984 = vmatpush1.msra.mxu0 0.0
        %985 = vmatprep.subr.mxu0 0.0
        %986 = vmatpush1.msra.mxu0 0.0
        %987 = vmatprep.subr.mxu0 0.0
        %988 = vmatpush1.msra.mxu0 0.0
        %989 = vmatprep.subr.mxu0 0.0
        %990 = vmatpush1.msra.mxu0 0.0
        %991 = vmatprep.subr.mxu0 0.0
        %992 = vmatpush1.msra.mxu0 0.0
        %993 = vmatprep.subr.mxu0 0.0
        %994 = vmatpush1.msra.mxu0 0.0
        %995 = vmatprep.subr.mxu0 0.0
        %996 = vmatpush1.msra.mxu0 0.0
        %997 = vmatprep.subr.mxu0 0.0
        %998 = vmatpush1.msra.mxu0 0.0
        %999 = vmatprep.subr.mxu0 0.0
        %1000 = vmatpush1.msra.mxu0 0.0
        %1001 = vmatprep.subr.mxu0 0.0
        %1002 = vmatpush1.msra.mxu0 0.0
        %1003 = vmatprep.mubr.f32.mxu0 0.0
        %1004 = vmatmul.mubr.f32.gmra.mrb[0].mxu0 %v938
        %v1005 = vpop.f32.mrb[0].mxu0
        %v1006 = vadd.f32 0.0, %v1005
        %v1007 = vpop.f32.mrb[0].mxu0
        %v1008 = vadd.f32 0.0, %v1007
        %1009 = vdwg.mxu0
        %1010 = vrot.lane.b32.xlu0 %v1006, 17
        %v1011 = vpop.permute.xlu0 %1010
        %1012 = vrot.lane.b32.xlu0 %v1008, 17
        %v1013 = vpop.permute.xlu0 %1012
        %v1014 = vsel %vm371, %v1011, %v1013
        %v1015 = vsel %vm371, %v1013, %v1011
        %v1016 = vmul.f32 %v1015, %v379
        %v1017 = vmul.f32 %v1014, %v383
        %v1018 = vadd.f32 %v774, %v1016
        %v1019 = vadd.f32 %v776, %v1017
        %s1020 = scalar_lea.vmem %s5, 8
        %v1021 = vld [vmem:[%s1020] sm:$0xff]
        %1022 = vmatprep.subr.mxu0 %v907
        %1023 = vmatpush1.msra.mxu0 %v906
        %1024 = vmatprep.subr.mxu0 %v909
        %1025 = vmatpush1.msra.mxu0 %v908
        %1026 = vmatprep.subr.mxu0 %v911
        %1027 = vmatpush1.msra.mxu0 %v910
        %1028 = vmatprep.subr.mxu0 %v913
        %1029 = vmatpush1.msra.mxu0 %v912
        %1030 = vmatprep.subr.mxu0 %v915
        %1031 = vmatpush1.msra.mxu0 %v914
        %1032 = vmatprep.subr.mxu0 %v917
        %1033 = vmatpush1.msra.mxu0 %v916
        %1034 = vmatprep.subr.mxu0 %v919
        %1035 = vmatpush1.msra.mxu0 %v918
        %1036 = vmatprep.subr.mxu0 %v921
        %1037 = vmatpush1.msra.mxu0 %v920
        %1038 = vmatprep.subr.mxu0 %v923
        %1039 = vmatpush1.msra.mxu0 %v922
        %1040 = vmatprep.subr.mxu0 %v925
        %1041 = vmatpush1.msra.mxu0 %v924
        %1042 = vmatprep.subr.mxu0 %v927
        %1043 = vmatpush1.msra.mxu0 %v926
        %1044 = vmatprep.subr.mxu0 %v929
        %1045 = vmatpush1.msra.mxu0 %v928
        %1046 = vmatprep.subr.mxu0 %v931
        %1047 = vmatpush1.msra.mxu0 %v930
        %1048 = vmatprep.subr.mxu0 %v933
        %1049 = vmatpush1.msra.mxu0 %v932
        %1050 = vmatprep.subr.mxu0 %v935
        %1051 = vmatpush1.msra.mxu0 %v934
        %1052 = vmatprep.subr.mxu0 %v937
        %1053 = vmatpush1.msra.mxu0 %v936
        %1054 = vmatprep.subr.mxu0 0.0
        %1055 = vmatpush1.msra.mxu0 0.0
        %1056 = vmatprep.subr.mxu0 0.0
        %1057 = vmatpush1.msra.mxu0 0.0
        %1058 = vmatprep.subr.mxu0 0.0
        %1059 = vmatpush1.msra.mxu0 0.0
        %1060 = vmatprep.subr.mxu0 0.0
        %1061 = vmatpush1.msra.mxu0 0.0
        %1062 = vmatprep.subr.mxu0 0.0
        %1063 = vmatpush1.msra.mxu0 0.0
        %1064 = vmatprep.subr.mxu0 0.0
        %1065 = vmatpush1.msra.mxu0 0.0
        %1066 = vmatprep.subr.mxu0 0.0
        %1067 = vmatpush1.msra.mxu0 0.0
        %1068 = vmatprep.subr.mxu0 0.0
        %1069 = vmatpush1.msra.mxu0 0.0
        %1070 = vmatprep.subr.mxu0 0.0
        %1071 = vmatpush1.msra.mxu0 0.0
        %1072 = vmatprep.subr.mxu0 0.0
        %1073 = vmatpush1.msra.mxu0 0.0
        %1074 = vmatprep.subr.mxu0 0.0
        %1075 = vmatpush1.msra.mxu0 0.0
        %1076 = vmatprep.subr.mxu0 0.0
        %1077 = vmatpush1.msra.mxu0 0.0
        %1078 = vmatprep.subr.mxu0 0.0
        %1079 = vmatpush1.msra.mxu0 0.0
        %1080 = vmatprep.subr.mxu0 0.0
        %1081 = vmatpush1.msra.mxu0 0.0
        %1082 = vmatprep.subr.mxu0 0.0
        %1083 = vmatpush1.msra.mxu0 0.0
        %1084 = vmatprep.subr.mxu0 0.0
        %1085 = vmatpush1.msra.mxu0 0.0
        %1086 = vmatprep.mubr.f32.mxu0 0.0
        %1087 = vmatmul.mubr.f32.gmra.mrb[0].mxu0 %v1021
        %v1088 = vpop.f32.mrb[0].mxu0
        %v1089 = vadd.f32 0.0, %v1088
        %v1090 = vpop.f32.mrb[0].mxu0
        %v1091 = vadd.f32 0.0, %v1090
        %1092 = vdwg.mxu0
        %1093 = vrot.lane.b32.xlu0 %v1089, 16
        %v1094 = vpop.permute.xlu0 %1093
        %1095 = vrot.lane.b32.xlu0 %v1091, 16
        %v1096 = vpop.permute.xlu0 %1095
        %v1097 = vsel %vm392, %v1094, %v1096
        %v1098 = vsel %vm392, %v1096, %v1094
        %v1099 = vmul.f32 %v1098, %v401
        %v1100 = vmul.f32 %v1097, %v405
        %v1101 = vadd.f32 %v1018, %v1099
        %v1102 = vadd.f32 %v1019, %v1100
        %s1103 = scalar_lea.vmem %s5, 16
        %v1104 = vld [vmem:[%s1103] sm:$0xff]
        %1105 = vmatprep.subr.mxu0 %v907
        %1106 = vmatpush1.msra.mxu0 %v906
        %1107 = vmatprep.subr.mxu0 %v909
        %1108 = vmatpush1.msra.mxu0 %v908
        %1109 = vmatprep.subr.mxu0 %v911
        %1110 = vmatpush1.msra.mxu0 %v910
        %1111 = vmatprep.subr.mxu0 %v913
        %1112 = vmatpush1.msra.mxu0 %v912
        %1113 = vmatprep.subr.mxu0 %v915
        %1114 = vmatpush1.msra.mxu0 %v914
        %1115 = vmatprep.subr.mxu0 %v917
        %1116 = vmatpush1.msra.mxu0 %v916
        %1117 = vmatprep.subr.mxu0 %v919
        %1118 = vmatpush1.msra.mxu0 %v918
        %1119 = vmatprep.subr.mxu0 %v921
        %1120 = vmatpush1.msra.mxu0 %v920
        %1121 = vmatprep.subr.mxu0 %v923
        %1122 = vmatpush1.msra.mxu0 %v922
        %1123 = vmatprep.subr.mxu0 %v925
        %1124 = vmatpush1.msra.mxu0 %v924
        %1125 = vmatprep.subr.mxu0 %v927
        %1126 = vmatpush1.msra.mxu0 %v926
        %1127 = vmatprep.subr.mxu0 %v929
        %1128 = vmatpush1.msra.mxu0 %v928
        %1129 = vmatprep.subr.mxu0 %v931
        %1130 = vmatpush1.msra.mxu0 %v930
        %1131 = vmatprep.subr.mxu0 %v933
        %1132 = vmatpush1.msra.mxu0 %v932
        %1133 = vmatprep.subr.mxu0 %v935
        %1134 = vmatpush1.msra.mxu0 %v934
        %1135 = vmatprep.subr.mxu0 %v937
        %1136 = vmatpush1.msra.mxu0 %v936
        %1137 = vmatprep.subr.mxu0 0.0
        %1138 = vmatpush1.msra.mxu0 0.0
        %1139 = vmatprep.subr.mxu0 0.0
        %1140 = vmatpush1.msra.mxu0 0.0
        %1141 = vmatprep.subr.mxu0 0.0
        %1142 = vmatpush1.msra.mxu0 0.0
        %1143 = vmatprep.subr.mxu0 0.0
        %1144 = vmatpush1.msra.mxu0 0.0
        %1145 = vmatprep.subr.mxu0 0.0
        %1146 = vmatpush1.msra.mxu0 0.0
        %1147 = vmatprep.subr.mxu0 0.0
        %1148 = vmatpush1.msra.mxu0 0.0
        %1149 = vmatprep.subr.mxu0 0.0
        %1150 = vmatpush1.msra.mxu0 0.0
        %1151 = vmatprep.subr.mxu0 0.0
        %1152 = vmatpush1.msra.mxu0 0.0
        %1153 = vmatprep.subr.mxu0 0.0
        %1154 = vmatpush1.msra.mxu0 0.0
        %1155 = vmatprep.subr.mxu0 0.0
        %1156 = vmatpush1.msra.mxu0 0.0
        %1157 = vmatprep.subr.mxu0 0.0
        %1158 = vmatpush1.msra.mxu0 0.0
        %1159 = vmatprep.subr.mxu0 0.0
        %1160 = vmatpush1.msra.mxu0 0.0
        %1161 = vmatprep.subr.mxu0 0.0
        %1162 = vmatpush1.msra.mxu0 0.0
        %1163 = vmatprep.subr.mxu0 0.0
        %1164 = vmatpush1.msra.mxu0 0.0
        %1165 = vmatprep.subr.mxu0 0.0
        %1166 = vmatpush1.msra.mxu0 0.0
        %1167 = vmatprep.subr.mxu0 0.0
        %1168 = vmatpush1.msra.mxu0 0.0
        %1169 = vmatprep.mubr.f32.mxu0 0.0
        %1170 = vmatmul.mubr.f32.gmra.mrb[0].mxu0 %v1104
        %v1171 = vpop.f32.mrb[0].mxu0
        %v1172 = vadd.f32 0.0, %v1171
        %v1173 = vpop.f32.mrb[0].mxu0
        %v1174 = vadd.f32 0.0, %v1173
        %1175 = vdwg.mxu0
        %1176 = vrot.lane.b32.xlu0 %v1172, 15
        %v1177 = vpop.permute.xlu0 %1176
        %1178 = vrot.lane.b32.xlu0 %v1174, 15
        %v1179 = vpop.permute.xlu0 %1178
        %v1180 = vsel %vm414, %v1177, %v1179
        %v1181 = vsel %vm414, %v1179, %v1177
        %v1182 = vmul.f32 %v1181, %v423
        %v1183 = vmul.f32 %v1180, %v427
        %v1184 = vadd.f32 %v1101, %v1182
        %v1185 = vadd.f32 %v1102, %v1183
        %s1186 = scalar_lea.vmem %s5, 24
        %v1187 = vld [vmem:[%s1186] sm:$0xff]
        %1188 = vmatprep.subr.mxu0 %v907
        %1189 = vmatpush1.msra.mxu0 %v906
        %1190 = vmatprep.subr.mxu0 %v909
        %1191 = vmatpush1.msra.mxu0 %v908
        %1192 = vmatprep.subr.mxu0 %v911
        %1193 = vmatpush1.msra.mxu0 %v910
        %1194 = vmatprep.subr.mxu0 %v913
        %1195 = vmatpush1.msra.mxu0 %v912
        %1196 = vmatprep.subr.mxu0 %v915
        %1197 = vmatpush1.msra.mxu0 %v914
        %1198 = vmatprep.subr.mxu0 %v917
        %1199 = vmatpush1.msra.mxu0 %v916
        %1200 = vmatprep.subr.mxu0 %v919
        %1201 = vmatpush1.msra.mxu0 %v918
        %1202 = vmatprep.subr.mxu0 %v921
        %1203 = vmatpush1.msra.mxu0 %v920
        %1204 = vmatprep.subr.mxu0 %v923
        %1205 = vmatpush1.msra.mxu0 %v922
        %1206 = vmatprep.subr.mxu0 %v925
        %1207 = vmatpush1.msra.mxu0 %v924
        %1208 = vmatprep.subr.mxu0 %v927
        %1209 = vmatpush1.msra.mxu0 %v926
        %1210 = vmatprep.subr.mxu0 %v929
        %1211 = vmatpush1.msra.mxu0 %v928
        %1212 = vmatprep.subr.mxu0 %v931
        %1213 = vmatpush1.msra.mxu0 %v930
        %1214 = vmatprep.subr.mxu0 %v933
        %1215 = vmatpush1.msra.mxu0 %v932
        %1216 = vmatprep.subr.mxu0 %v935
        %1217 = vmatpush1.msra.mxu0 %v934
        %1218 = vmatprep.subr.mxu0 %v937
        %1219 = vmatpush1.msra.mxu0 %v936
        %1220 = vmatprep.subr.mxu0 0.0
        %1221 = vmatpush1.msra.mxu0 0.0
        %1222 = vmatprep.subr.mxu0 0.0
        %1223 = vmatpush1.msra.mxu0 0.0
        %1224 = vmatprep.subr.mxu0 0.0
        %1225 = vmatpush1.msra.mxu0 0.0
        %1226 = vmatprep.subr.mxu0 0.0
        %1227 = vmatpush1.msra.mxu0 0.0
        %1228 = vmatprep.subr.mxu0 0.0
        %1229 = vmatpush1.msra.mxu0 0.0
        %1230 = vmatprep.subr.mxu0 0.0
        %1231 = vmatpush1.msra.mxu0 0.0
        %1232 = vmatprep.subr.mxu0 0.0
        %1233 = vmatpush1.msra.mxu0 0.0
        %1234 = vmatprep.subr.mxu0 0.0
        %1235 = vmatpush1.msra.mxu0 0.0
        %1236 = vmatprep.subr.mxu0 0.0
        %1237 = vmatpush1.msra.mxu0 0.0
        %1238 = vmatprep.subr.mxu0 0.0
        %1239 = vmatpush1.msra.mxu0 0.0
        %1240 = vmatprep.subr.mxu0 0.0
        %1241 = vmatpush1.msra.mxu0 0.0
        %1242 = vmatprep.subr.mxu0 0.0
        %1243 = vmatpush1.msra.mxu0 0.0
        %1244 = vmatprep.subr.mxu0 0.0
        %1245 = vmatpush1.msra.mxu0 0.0
        %1246 = vmatprep.subr.mxu0 0.0
        %1247 = vmatpush1.msra.mxu0 0.0
        %1248 = vmatprep.subr.mxu0 0.0
        %1249 = vmatpush1.msra.mxu0 0.0
        %1250 = vmatprep.subr.mxu0 0.0
        %1251 = vmatpush1.msra.mxu0 0.0
        %1252 = vmatprep.mubr.f32.mxu0 0.0
        %1253 = vmatmul.mubr.f32.gmra.mrb[0].mxu0 %v1187
        %v1254 = vpop.f32.mrb[0].mxu0
        %v1255 = vadd.f32 0.0, %v1254
        %v1256 = vpop.f32.mrb[0].mxu0
        %v1257 = vadd.f32 0.0, %v1256
        %1258 = vdwg.mxu0
        %1259 = vrot.lane.b32.xlu0 %v1255, 1
        %v1260 = vpop.permute.xlu0 %1259
        %1261 = vrot.lane.b32.xlu0 %v1257, 1
        %v1262 = vpop.permute.xlu0 %1261
        %v1263 = vsel %vm436, %v1260, %v1262
        %v1264 = vsel %vm436, %v1262, %v1260
        %v1265 = vmul.f32 %v1264, %v445
        %v1266 = vmul.f32 %v1263, %v449
        %v1267 = vadd.f32 %v1184, %v1265
        %v1268 = vadd.f32 %v1185, %v1266
        %s1269 = scalar_lea.vmem %s5, 32
        %v1270 = vld [vmem:[%s1269] sm:$0xff]
        %1271 = vmatprep.subr.mxu0 %v907
        %1272 = vmatpush1.msra.mxu0 %v906
        %1273 = vmatprep.subr.mxu0 %v909
        %1274 = vmatpush1.msra.mxu0 %v908
        %1275 = vmatprep.subr.mxu0 %v911
        %1276 = vmatpush1.msra.mxu0 %v910
        %1277 = vmatprep.subr.mxu0 %v913
        %1278 = vmatpush1.msra.mxu0 %v912
        %1279 = vmatprep.subr.mxu0 %v915
        %1280 = vmatpush1.msra.mxu0 %v914
        %1281 = vmatprep.subr.mxu0 %v917
        %1282 = vmatpush1.msra.mxu0 %v916
        %1283 = vmatprep.subr.mxu0 %v919
        %1284 = vmatpush1.msra.mxu0 %v918
        %1285 = vmatprep.subr.mxu0 %v921
        %1286 = vmatpush1.msra.mxu0 %v920
        %1287 = vmatprep.subr.mxu0 %v923
        %1288 = vmatpush1.msra.mxu0 %v922
        %1289 = vmatprep.subr.mxu0 %v925
        %1290 = vmatpush1.msra.mxu0 %v924
        %1291 = vmatprep.subr.mxu0 %v927
        %1292 = vmatpush1.msra.mxu0 %v926
        %1293 = vmatprep.subr.mxu0 %v929
        %1294 = vmatpush1.msra.mxu0 %v928
        %1295 = vmatprep.subr.mxu0 %v931
        %1296 = vmatpush1.msra.mxu0 %v930
        %1297 = vmatprep.subr.mxu0 %v933
        %1298 = vmatpush1.msra.mxu0 %v932
        %1299 = vmatprep.subr.mxu0 %v935
        %1300 = vmatpush1.msra.mxu0 %v934
        %1301 = vmatprep.subr.mxu0 %v937
        %1302 = vmatpush1.msra.mxu0 %v936
        %1303 = vmatprep.subr.mxu0 0.0
        %1304 = vmatpush1.msra.mxu0 0.0
        %1305 = vmatprep.subr.mxu0 0.0
        %1306 = vmatpush1.msra.mxu0 0.0
        %1307 = vmatprep.subr.mxu0 0.0
        %1308 = vmatpush1.msra.mxu0 0.0
        %1309 = vmatprep.subr.mxu0 0.0
        %1310 = vmatpush1.msra.mxu0 0.0
        %1311 = vmatprep.subr.mxu0 0.0
        %1312 = vmatpush1.msra.mxu0 0.0
        %1313 = vmatprep.subr.mxu0 0.0
        %1314 = vmatpush1.msra.mxu0 0.0
        %1315 = vmatprep.subr.mxu0 0.0
        %1316 = vmatpush1.msra.mxu0 0.0
        %1317 = vmatprep.subr.mxu0 0.0
        %1318 = vmatpush1.msra.mxu0 0.0
        %1319 = vmatprep.subr.mxu0 0.0
        %1320 = vmatpush1.msra.mxu0 0.0
        %1321 = vmatprep.subr.mxu0 0.0
        %1322 = vmatpush1.msra.mxu0 0.0
        %1323 = vmatprep.subr.mxu0 0.0
        %1324 = vmatpush1.msra.mxu0 0.0
        %1325 = vmatprep.subr.mxu0 0.0
        %1326 = vmatpush1.msra.mxu0 0.0
        %1327 = vmatprep.subr.mxu0 0.0
        %1328 = vmatpush1.msra.mxu0 0.0
        %1329 = vmatprep.subr.mxu0 0.0
        %1330 = vmatpush1.msra.mxu0 0.0
        %1331 = vmatprep.subr.mxu0 0.0
        %1332 = vmatpush1.msra.mxu0 0.0
        %1333 = vmatprep.subr.mxu0 0.0
        %1334 = vmatpush1.msra.mxu0 0.0
        %1335 = vmatprep.mubr.f32.mxu0 0.0
        %1336 = vmatmul.mubr.f32.gmra.mrb[0].mxu0 %v1270
        %v1337 = vpop.f32.mrb[0].mxu0
        %v1338 = vadd.f32 0.0, %v1337
        %v1339 = vpop.f32.mrb[0].mxu0
        %v1340 = vadd.f32 0.0, %v1339
        %1341 = vdwg.mxu0
        %v1342 = vadd.f32 %v1267, %v1338
        %v1343 = vadd.f32 %v1268, %v1340
        %s1344 = scalar_lea.vmem %s5, 40
        %v1345 = vld [vmem:[%s1344] sm:$0xff]
        %1346 = vmatprep.subr.mxu0 %v907
        %1347 = vmatpush1.msra.mxu0 %v906
        %1348 = vmatprep.subr.mxu0 %v909
        %1349 = vmatpush1.msra.mxu0 %v908
        %1350 = vmatprep.subr.mxu0 %v911
        %1351 = vmatpush1.msra.mxu0 %v910
        %1352 = vmatprep.subr.mxu0 %v913
        %1353 = vmatpush1.msra.mxu0 %v912
        %1354 = vmatprep.subr.mxu0 %v915
        %1355 = vmatpush1.msra.mxu0 %v914
        %1356 = vmatprep.subr.mxu0 %v917
        %1357 = vmatpush1.msra.mxu0 %v916
        %1358 = vmatprep.subr.mxu0 %v919
        %1359 = vmatpush1.msra.mxu0 %v918
        %1360 = vmatprep.subr.mxu0 %v921
        %1361 = vmatpush1.msra.mxu0 %v920
        %1362 = vmatprep.subr.mxu0 %v923
        %1363 = vmatpush1.msra.mxu0 %v922
        %1364 = vmatprep.subr.mxu0 %v925
        %1365 = vmatpush1.msra.mxu0 %v924
        %1366 = vmatprep.subr.mxu0 %v927
        %1367 = vmatpush1.msra.mxu0 %v926
        %1368 = vmatprep.subr.mxu0 %v929
        %1369 = vmatpush1.msra.mxu0 %v928
        %1370 = vmatprep.subr.mxu0 %v931
        %1371 = vmatpush1.msra.mxu0 %v930
        %1372 = vmatprep.subr.mxu0 %v933
        %1373 = vmatpush1.msra.mxu0 %v932
        %1374 = vmatprep.subr.mxu0 %v935
        %1375 = vmatpush1.msra.mxu0 %v934
        %1376 = vmatprep.subr.mxu0 %v937
        %1377 = vmatpush1.msra.mxu0 %v936
        %1378 = vmatprep.subr.mxu0 0.0
        %1379 = vmatpush1.msra.mxu0 0.0
        %1380 = vmatprep.subr.mxu0 0.0
        %1381 = vmatpush1.msra.mxu0 0.0
        %1382 = vmatprep.subr.mxu0 0.0
        %1383 = vmatpush1.msra.mxu0 0.0
        %1384 = vmatprep.subr.mxu0 0.0
        %1385 = vmatpush1.msra.mxu0 0.0
        %1386 = vmatprep.subr.mxu0 0.0
        %1387 = vmatpush1.msra.mxu0 0.0
        %1388 = vmatprep.subr.mxu0 0.0
        %1389 = vmatpush1.msra.mxu0 0.0
        %1390 = vmatprep.subr.mxu0 0.0
        %1391 = vmatpush1.msra.mxu0 0.0
        %1392 = vmatprep.subr.mxu0 0.0
        %1393 = vmatpush1.msra.mxu0 0.0
        %1394 = vmatprep.subr.mxu0 0.0
        %1395 = vmatpush1.msra.mxu0 0.0
        %1396 = vmatprep.subr.mxu0 0.0
        %1397 = vmatpush1.msra.mxu0 0.0
        %1398 = vmatprep.subr.mxu0 0.0
        %1399 = vmatpush1.msra.mxu0 0.0
        %1400 = vmatprep.subr.mxu0 0.0
        %1401 = vmatpush1.msra.mxu0 0.0
        %1402 = vmatprep.subr.mxu0 0.0
        %1403 = vmatpush1.msra.mxu0 0.0
        %1404 = vmatprep.subr.mxu0 0.0
        %1405 = vmatpush1.msra.mxu0 0.0
        %1406 = vmatprep.subr.mxu0 0.0
        %1407 = vmatpush1.msra.mxu0 0.0
        %1408 = vmatprep.subr.mxu0 0.0
        %1409 = vmatpush1.msra.mxu0 0.0
        %1410 = vmatprep.mubr.f32.mxu0 0.0
        %1411 = vmatmul.mubr.f32.gmra.mrb[0].mxu0 %v1345
        %v1412 = vpop.f32.mrb[0].mxu0
        %v1413 = vadd.f32 0.0, %v1412
        %v1414 = vpop.f32.mrb[0].mxu0
        %v1415 = vadd.f32 0.0, %v1414
        %1416 = vdwg.mxu0
        %1417 = vrot.lane.b32.xlu0 %v1413, 127
        %v1418 = vpop.permute.xlu0 %1417
        %1419 = vrot.lane.b32.xlu0 %v1415, 127
        %v1420 = vpop.permute.xlu0 %1419
        %v1421 = vsel %vm458, %v1418, %v1420
        %v1422 = vsel %vm458, %v1420, %v1418
        %v1423 = vmul.f32 %v1421, %v467
        %v1424 = vmul.f32 %v1422, %v471
        %v1425 = vadd.f32 %v1342, %v1423
        %v1426 = vadd.f32 %v1343, %v1424
        %s1427 = scalar_lea.vmem %s5, 48
        %v1428 = vld [vmem:[%s1427] sm:$0xff]
        %1429 = vmatprep.subr.mxu0 %v907
        %1430 = vmatpush1.msra.mxu0 %v906
        %1431 = vmatprep.subr.mxu0 %v909
        %1432 = vmatpush1.msra.mxu0 %v908
        %1433 = vmatprep.subr.mxu0 %v911
        %1434 = vmatpush1.msra.mxu0 %v910
        %1435 = vmatprep.subr.mxu0 %v913
        %1436 = vmatpush1.msra.mxu0 %v912
        %1437 = vmatprep.subr.mxu0 %v915
        %1438 = vmatpush1.msra.mxu0 %v914
        %1439 = vmatprep.subr.mxu0 %v917
        %1440 = vmatpush1.msra.mxu0 %v916
        %1441 = vmatprep.subr.mxu0 %v919
        %1442 = vmatpush1.msra.mxu0 %v918
        %1443 = vmatprep.subr.mxu0 %v921
        %1444 = vmatpush1.msra.mxu0 %v920
        %1445 = vmatprep.subr.mxu0 %v923
        %1446 = vmatpush1.msra.mxu0 %v922
        %1447 = vmatprep.subr.mxu0 %v925
        %1448 = vmatpush1.msra.mxu0 %v924
        %1449 = vmatprep.subr.mxu0 %v927
        %1450 = vmatpush1.msra.mxu0 %v926
        %1451 = vmatprep.subr.mxu0 %v929
        %1452 = vmatpush1.msra.mxu0 %v928
        %1453 = vmatprep.subr.mxu0 %v931
        %1454 = vmatpush1.msra.mxu0 %v930
        %1455 = vmatprep.subr.mxu0 %v933
        %1456 = vmatpush1.msra.mxu0 %v932
        %1457 = vmatprep.subr.mxu0 %v935
        %1458 = vmatpush1.msra.mxu0 %v934
        %1459 = vmatprep.subr.mxu0 %v937
        %1460 = vmatpush1.msra.mxu0 %v936
        %1461 = vmatprep.subr.mxu0 0.0
        %1462 = vmatpush1.msra.mxu0 0.0
        %1463 = vmatprep.subr.mxu0 0.0
        %1464 = vmatpush1.msra.mxu0 0.0
        %1465 = vmatprep.subr.mxu0 0.0
        %1466 = vmatpush1.msra.mxu0 0.0
        %1467 = vmatprep.subr.mxu0 0.0
        %1468 = vmatpush1.msra.mxu0 0.0
        %1469 = vmatprep.subr.mxu0 0.0
        %1470 = vmatpush1.msra.mxu0 0.0
        %1471 = vmatprep.subr.mxu0 0.0
        %1472 = vmatpush1.msra.mxu0 0.0
        %1473 = vmatprep.subr.mxu0 0.0
        %1474 = vmatpush1.msra.mxu0 0.0
        %1475 = vmatprep.subr.mxu0 0.0
        %1476 = vmatpush1.msra.mxu0 0.0
        %1477 = vmatprep.subr.mxu0 0.0
        %1478 = vmatpush1.msra.mxu0 0.0
        %1479 = vmatprep.subr.mxu0 0.0
        %1480 = vmatpush1.msra.mxu0 0.0
        %1481 = vmatprep.subr.mxu0 0.0
        %1482 = vmatpush1.msra.mxu0 0.0
        %1483 = vmatprep.subr.mxu0 0.0
        %1484 = vmatpush1.msra.mxu0 0.0
        %1485 = vmatprep.subr.mxu0 0.0
        %1486 = vmatpush1.msra.mxu0 0.0
        %1487 = vmatprep.subr.mxu0 0.0
        %1488 = vmatpush1.msra.mxu0 0.0
        %1489 = vmatprep.subr.mxu0 0.0
        %1490 = vmatpush1.msra.mxu0 0.0
        %1491 = vmatprep.subr.mxu0 0.0
        %1492 = vmatpush1.msra.mxu0 0.0
        %1493 = vmatprep.mubr.f32.mxu0 0.0
        %1494 = vmatmul.mubr.f32.gmra.mrb[0].mxu0 %v1428
        %v1495 = vpop.f32.mrb[0].mxu0
        %v1496 = vadd.f32 0.0, %v1495
        %v1497 = vpop.f32.mrb[0].mxu0
        %v1498 = vadd.f32 0.0, %v1497
        %1499 = vdwg.mxu0
        %1500 = vrot.lane.b32.xlu0 %v1496, 113
        %v1501 = vpop.permute.xlu0 %1500
        %1502 = vrot.lane.b32.xlu0 %v1498, 113
        %v1503 = vpop.permute.xlu0 %1502
        %v1504 = vsel %vm480, %v1501, %v1503
        %v1505 = vsel %vm480, %v1503, %v1501
        %v1506 = vmul.f32 %v1504, %v489
        %v1507 = vmul.f32 %v1505, %v493
        %v1508 = vadd.f32 %v1425, %v1506
        %v1509 = vadd.f32 %v1426, %v1507
        %s1510 = scalar_lea.vmem %s5, 56
        %v1511 = vld [vmem:[%s1510] sm:$0xff]
        %1512 = vmatprep.subr.mxu0 %v907
        %1513 = vmatpush1.msra.mxu0 %v906
        %1514 = vmatprep.subr.mxu0 %v909
        %1515 = vmatpush1.msra.mxu0 %v908
        %1516 = vmatprep.subr.mxu0 %v911
        %1517 = vmatpush1.msra.mxu0 %v910
        %1518 = vmatprep.subr.mxu0 %v913
        %1519 = vmatpush1.msra.mxu0 %v912
        %1520 = vmatprep.subr.mxu0 %v915
        %1521 = vmatpush1.msra.mxu0 %v914
        %1522 = vmatprep.subr.mxu0 %v917
        %1523 = vmatpush1.msra.mxu0 %v916
        %1524 = vmatprep.subr.mxu0 %v919
        %1525 = vmatpush1.msra.mxu0 %v918
        %1526 = vmatprep.subr.mxu0 %v921
        %1527 = vmatpush1.msra.mxu0 %v920
        %1528 = vmatprep.subr.mxu0 %v923
        %1529 = vmatpush1.msra.mxu0 %v922
        %1530 = vmatprep.subr.mxu0 %v925
        %1531 = vmatpush1.msra.mxu0 %v924
        %1532 = vmatprep.subr.mxu0 %v927
        %1533 = vmatpush1.msra.mxu0 %v926
        %1534 = vmatprep.subr.mxu0 %v929
        %1535 = vmatpush1.msra.mxu0 %v928
        %1536 = vmatprep.subr.mxu0 %v931
        %1537 = vmatpush1.msra.mxu0 %v930
        %1538 = vmatprep.subr.mxu0 %v933
        %1539 = vmatpush1.msra.mxu0 %v932
        %1540 = vmatprep.subr.mxu0 %v935
        %1541 = vmatpush1.msra.mxu0 %v934
        %1542 = vmatprep.subr.mxu0 %v937
        %1543 = vmatpush1.msra.mxu0 %v936
        %1544 = vmatprep.subr.mxu0 0.0
        %1545 = vmatpush1.msra.mxu0 0.0
        %1546 = vmatprep.subr.mxu0 0.0
        %1547 = vmatpush1.msra.mxu0 0.0
        %1548 = vmatprep.subr.mxu0 0.0
        %1549 = vmatpush1.msra.mxu0 0.0
        %1550 = vmatprep.subr.mxu0 0.0
        %1551 = vmatpush1.msra.mxu0 0.0
        %1552 = vmatprep.subr.mxu0 0.0
        %1553 = vmatpush1.msra.mxu0 0.0
        %1554 = vmatprep.subr.mxu0 0.0
        %1555 = vmatpush1.msra.mxu0 0.0
        %1556 = vmatprep.subr.mxu0 0.0
        %1557 = vmatpush1.msra.mxu0 0.0
        %1558 = vmatprep.subr.mxu0 0.0
        %1559 = vmatpush1.msra.mxu0 0.0
        %1560 = vmatprep.subr.mxu0 0.0
        %1561 = vmatpush1.msra.mxu0 0.0
        %1562 = vmatprep.subr.mxu0 0.0
        %1563 = vmatpush1.msra.mxu0 0.0
        %1564 = vmatprep.subr.mxu0 0.0
        %1565 = vmatpush1.msra.mxu0 0.0
        %1566 = vmatprep.subr.mxu0 0.0
        %1567 = vmatpush1.msra.mxu0 0.0
        %1568 = vmatprep.subr.mxu0 0.0
        %1569 = vmatpush1.msra.mxu0 0.0
        %1570 = vmatprep.subr.mxu0 0.0
        %1571 = vmatpush1.msra.mxu0 0.0
        %1572 = vmatprep.subr.mxu0 0.0
        %1573 = vmatpush1.msra.mxu0 0.0
        %1574 = vmatprep.subr.mxu0 0.0
        %1575 = vmatpush1.msra.mxu0 0.0
        %1576 = vmatprep.mubr.f32.mxu0 0.0
        %1577 = vmatmul.mubr.f32.gmra.mrb[0].mxu0 %v1511
        %v1578 = vpop.f32.mrb[0].mxu0
        %v1579 = vadd.f32 0.0, %v1578
        %v1580 = vpop.f32.mrb[0].mxu0
        %v1581 = vadd.f32 0.0, %v1580
        %1582 = vdwg.mxu0
        %1583 = vrot.lane.b32.xlu0 %v1579, 112
        %v1584 = vpop.permute.xlu0 %1583
        %1585 = vrot.lane.b32.xlu0 %v1581, 112
        %v1586 = vpop.permute.xlu0 %1585
        %v1587 = vsel %vm502, %v1584, %v1586
        %v1588 = vsel %vm502, %v1586, %v1584
        %v1589 = vmul.f32 %v1587, %v511
        %v1590 = vmul.f32 %v1588, %v515
        %v1591 = vadd.f32 %v1508, %v1589
        %v1592 = vadd.f32 %v1509, %v1590
        %s1593 = scalar_lea.vmem %s5, 64
        %v1594 = vld [vmem:[%s1593] sm:$0xff]
        %1595 = vmatprep.subr.mxu0 %v907
        %1596 = vmatpush1.msra.mxu0 %v906
        %1597 = vmatprep.subr.mxu0 %v909
        %1598 = vmatpush1.msra.mxu0 %v908
        %1599 = vmatprep.subr.mxu0 %v911
        %1600 = vmatpush1.msra.mxu0 %v910
        %1601 = vmatprep.subr.mxu0 %v913
        %1602 = vmatpush1.msra.mxu0 %v912
        %1603 = vmatprep.subr.mxu0 %v915
        %1604 = vmatpush1.msra.mxu0 %v914
        %1605 = vmatprep.subr.mxu0 %v917
        %1606 = vmatpush1.msra.mxu0 %v916
        %1607 = vmatprep.subr.mxu0 %v919
        %1608 = vmatpush1.msra.mxu0 %v918
        %1609 = vmatprep.subr.mxu0 %v921
        %1610 = vmatpush1.msra.mxu0 %v920
        %1611 = vmatprep.subr.mxu0 %v923
        %1612 = vmatpush1.msra.mxu0 %v922
        %1613 = vmatprep.subr.mxu0 %v925
        %1614 = vmatpush1.msra.mxu0 %v924
        %1615 = vmatprep.subr.mxu0 %v927
        %1616 = vmatpush1.msra.mxu0 %v926
        %1617 = vmatprep.subr.mxu0 %v929
        %1618 = vmatpush1.msra.mxu0 %v928
        %1619 = vmatprep.subr.mxu0 %v931
        %1620 = vmatpush1.msra.mxu0 %v930
        %1621 = vmatprep.subr.mxu0 %v933
        %1622 = vmatpush1.msra.mxu0 %v932
        %1623 = vmatprep.subr.mxu0 %v935
        %1624 = vmatpush1.msra.mxu0 %v934
        %1625 = vmatprep.subr.mxu0 %v937
        %1626 = vmatpush1.msra.mxu0 %v936
        %1627 = vmatprep.subr.mxu0 0.0
        %1628 = vmatpush1.msra.mxu0 0.0
        %1629 = vmatprep.subr.mxu0 0.0
        %1630 = vmatpush1.msra.mxu0 0.0
        %1631 = vmatprep.subr.mxu0 0.0
        %1632 = vmatpush1.msra.mxu0 0.0
        %1633 = vmatprep.subr.mxu0 0.0
        %1634 = vmatpush1.msra.mxu0 0.0
        %1635 = vmatprep.subr.mxu0 0.0
        %1636 = vmatpush1.msra.mxu0 0.0
        %1637 = vmatprep.subr.mxu0 0.0
        %1638 = vmatpush1.msra.mxu0 0.0
        %1639 = vmatprep.subr.mxu0 0.0
        %1640 = vmatpush1.msra.mxu0 0.0
        %1641 = vmatprep.subr.mxu0 0.0
        %1642 = vmatpush1.msra.mxu0 0.0
        %1643 = vmatprep.subr.mxu0 0.0
        %1644 = vmatpush1.msra.mxu0 0.0
        %1645 = vmatprep.subr.mxu0 0.0
        %1646 = vmatpush1.msra.mxu0 0.0
        %1647 = vmatprep.subr.mxu0 0.0
        %1648 = vmatpush1.msra.mxu0 0.0
        %1649 = vmatprep.subr.mxu0 0.0
        %1650 = vmatpush1.msra.mxu0 0.0
        %1651 = vmatprep.subr.mxu0 0.0
        %1652 = vmatpush1.msra.mxu0 0.0
        %1653 = vmatprep.subr.mxu0 0.0
        %1654 = vmatpush1.msra.mxu0 0.0
        %1655 = vmatprep.subr.mxu0 0.0
        %1656 = vmatpush1.msra.mxu0 0.0
        %1657 = vmatprep.subr.mxu0 0.0
        %1658 = vmatpush1.msra.mxu0 0.0
        %1659 = vmatprep.mubr.f32.mxu0 0.0
        %1660 = vmatmul.mubr.f32.gmra.mrb[0].mxu0 %v1594
        %v1661 = vpop.f32.mrb[0].mxu0
        %v1662 = vadd.f32 0.0, %v1661
        %v1663 = vpop.f32.mrb[0].mxu0
        %v1664 = vadd.f32 0.0, %v1663
        %1665 = vdwg.mxu0
        %1666 = vrot.lane.b32.xlu0 %v1662, 111
        %v1667 = vpop.permute.xlu0 %1666
        %1668 = vrot.lane.b32.xlu0 %v1664, 111
        %v1669 = vpop.permute.xlu0 %1668
        %v1670 = vsel %vm524, %v1667, %v1669
        %v1671 = vsel %vm524, %v1669, %v1667
        %v1672 = vmul.f32 %v1670, %v533
        %v1673 = vmul.f32 %v1671, %v537
        %v1674 = vadd.f32 %v1591, %v1672
        %v1675 = vadd.f32 %v1592, %v1673
        %v1676 = vld [vmem:[%s6] sm:$0xff]
        %1678 = vset.pattern.permute.xlu0 0
        %1679 = vperm.xlu0 %1678, %v1676
        %v1680 = vpop.permute.xlu0 %1679
        %v1682 = vadd.f32 %v1674, %v1680
        %v1683 = vadd.f32 %v1675, %v1680
        %v1686 = vunpack.c.l.s4 839922192
        %v1687 = vunpack.c.0.s8 %v1686
        %v1688 = vlaneseq
        %v1689 = vshrl.u32 %v1688, 7
        %v1690 = vsub.s32 %v1687, %v1689
        %v1691 = vrot.slane %v347, %v1690
        %v1693 = vsub.f32 %v337, %v1691
        %v1696 = vunpack.c.l.s4 839922192
        %v1697 = vunpack.c.0.s8 %v1696
        %v1698 = vlaneseq
        %v1699 = vshrl.u32 %v1698, 7
        %v1700 = vsub.s32 %v1697, %v1699
        %v1701 = vrot.slane %v362, %v1700
        %v1703 = vmul.f32 %v1693, %v1701
        %v1704 = vadd.f32 %v1682, 1.0
        %v1705 = vadd.f32 %v1683, 1.0
        %v1708 = vcombine.low %v1704, %v1705
        %v1710 = vmul.f32 %v1703, %v1708
        %v1713 = vcombine.high %v1682, %v1683
        %v1715 = vadd.f32 %v1710, %v1713
        %1716 = vst [vmem:[%s326] sm:$0xff] %v1715
        %s1717 = sand.u32 %s194, 1
        %s1718 = scalar_lea.sflag [#allocation4], %s1717
        %s1719 = sand.u32 %s194, 1
        %s1720 = smul.addr %s1719, 8
        %s1721 = scalar_lea.vmem [#allocation5], %s1720
        // Predicated region
        $region53: #{tpu_custom_call.1} parent=47 // pred_check
          %p1722 = pneg %p204
        $region54: #{tpu_custom_call.1} parent=47 // pred_check_branch
          %1724 = sbr.rel (%p1722) target = $region56
        $region55: #{tpu_custom_call.1} parent=47 // pred_region
          %s1726 = ssub.s32 128, 128
          %1727 = vsyncadd %s1718, %s1726
          %s1728 = smul.addr %s24, 2
          %s1729 = smul.addr %s1728, 64
          %s1730 = scalar_lea.hbm %s7, %s1729
          %s1732 = sshll.u32 %s1721, 4
          %s1733 = int_to_ptr.vmem [resolvable:$true] %s1732
          %1735 = dma.vmem_to_hbm [thread:$0]  %s1733, 128, %s1730, %s1718
        $region56: #{tpu_custom_call.1} parent=47 // pred_fallthru
          _
      $region48: #{tpu_custom_call.1} parent=5 // pred_fallthru
        _
      %p1736 = scmp.le.s32.totalorder 2, %s19
      // Predicated region
      $region57: #{tpu_custom_call.1} parent=5 // pred_check
        %p1737 = pneg %p1736
      $region58: #{tpu_custom_call.1} parent=5 // pred_check_branch
        %1739 = sbr.rel (%p1737) target = $region60
      $region59: #{tpu_custom_call.1} parent=5 // pred_region
        %s1740 = ssub.s32 %s19, 2
        // Predicated region
        $region61: #{tpu_custom_call.1} parent=59 // pred_check
          %p1741 = pneg %p210
        $region62: #{tpu_custom_call.1} parent=59 // pred_check_branch
          %1743 = sbr.rel (%p1741) target = $region64
        $region63: #{tpu_custom_call.1} parent=59 // pred_region
          %s1744 = sand.u32 %s195, 1
          %s1745 = scalar_lea.sflag [#allocation4], %s1744
          %s1746 = sand.u32 %s195, 1
          %s1747 = smul.addr %s1746, 8
          %s1748 = scalar_lea.vmem [#allocation5], %s1747
          %1749 = dma.done %s1745, 128
        $region64: #{tpu_custom_call.1} parent=59 // pred_fallthru
          _
      $region60: #{tpu_custom_call.1} parent=5 // pred_fallthru
        _
    $region6: #{tpu_custom_call.1} parent=1 // loop_footer
      %s23 = sadd.s32 1, %s19
    $region7: #{tpu_custom_call.1} parent=1 // loop_footer_branch
      %18 = sbr.rel target = $region3
    $region8: #{tpu_custom_call.1} parent=1 // loop_exit
      _
    %1750 = vsyncpa [#allocation3], 1
    %s1751 = scalar_lea.sflag [#allocation3], 1
    %1752 = vsyncpa %s1751, 1
    %1753 = vsyncpa [#allocation4], 1
    %s1754 = scalar_lea.sflag [#allocation4], 1
    %1755 = vsyncpa %s1754, 1

</llo_original>
